<compile_context>
chip_gen: v6e
topology: v6e:2x2x1
jax: 0.10.0
libtpu: 0.0.40
codegen_flags: <defaults>
</compile_context>

<pallas_src>
import functools

import jax
import jax.numpy as jnp
from jax import lax
from jax.experimental import pallas as pl
from jax.experimental.pallas import tpu as pltpu


def _round_up(n, m):
    return ((n + m - 1) // m) * m


def _vmem_plan():
    """(streaming_budget_bytes, vmem_limit_bytes), chip-aware with fallback."""
    try:
        cap = pltpu.get_tpu_info().vmem_capacity_bytes
    except Exception:  # no device / older API: assume the smallest (v7x-like)
        cap = 64 << 20
    if cap >= (100 << 20):          # v5e / v6e: 128 MiB physical VMEM
        return 64 << 20, 96 << 20
    return 24 << 20, 48 << 20       # v7x: 64 MiB physical VMEM


# --------------------------- tiled matmul + bias ------------------------------

def _matmul_bias_kernel(x_ref, w_ref, b_ref, o_ref, acc_ref):
    @pl.when(pl.program_id(2) == 0)
    def _zero():
        acc_ref[...] = jnp.zeros_like(acc_ref)

    acc_ref[...] += jnp.dot(x_ref[...], w_ref[...],
                            preferred_element_type=jnp.float32)

    @pl.when(pl.program_id(2) == pl.num_programs(2) - 1)
    def _store():
        o_ref[...] = (acc_ref[...] + b_ref[...]).astype(o_ref.dtype)


def matmul_bias(x2d, w_t, b, out_dtype, *, vmem_limit,
                tm_cap=512, tn_cap=1024, tk_cap=512):
    """(M, K) @ (K, N) + b -> (M, N) in `out_dtype`.

    bf16 MXU operands, f32 accumulation in VMEM scratch, bias added once at
    the final K step.  M/N/K are zero-padded to (8,128)-aligned tiles so all
    blocks (and stores) are lane-dense; padding is sliced off afterwards.
    """
    M, K = x2d.shape
    N = w_t.shape[1]
    tm = min(_round_up(M, 8), tm_cap)
    tn = min(_round_up(N, 128), tn_cap)
    tk = min(_round_up(K, 128), tk_cap)
    Mp, Np, Kp = _round_up(M, tm), _round_up(N, tn), _round_up(K, tk)

    x_p = x2d.astype(jnp.bfloat16)
    if (Mp, Kp) != (M, K):
        x_p = jnp.pad(x_p, ((0, Mp - M), (0, Kp - K)))
    w_p = w_t.astype(jnp.bfloat16)
    if (Kp, Np) != (K, N):
        w_p = jnp.pad(w_p, ((0, Kp - K), (0, Np - N)))
    b_p = b.astype(jnp.float32).reshape(1, N)
    if Np != N:
        b_p = jnp.pad(b_p, ((0, 0), (0, Np - N)))

    grid = (Mp // tm, Np // tn, Kp // tk)
    out = pl.pallas_call(
        _matmul_bias_kernel,
        out_shape=jax.ShapeDtypeStruct((Mp, Np), out_dtype),
        grid=grid,
        in_specs=[
            pl.BlockSpec((tm, tk), lambda i, j, k: (i, k)),
            pl.BlockSpec((tk, tn), lambda i, j, k: (k, j)),
            pl.BlockSpec((1, tn), lambda i, j, k: (0, j)),
        ],
        out_specs=pl.BlockSpec((tm, tn), lambda i, j, k: (i, j)),
        scratch_shapes=[pltpu.VMEM((tm, tn), jnp.float32)],
        compiler_params=pltpu.CompilerParams(
            dimension_semantics=("parallel", "parallel", "arbitrary"),
            vmem_limit_bytes=int(vmem_limit)),
    )(x_p, w_p, b_p)

    if (Mp, Np) != (M, N):
        out = out[:M, :N]
    return out


# --------------------------- recurrent LSTM kernel ----------------------------

def _lstm_recurrent_kernel(xp_ref, w_hh_ref, out_ref, h_scr, c_scr,
                           *, hidden_size, chunk):
    """Processes `chunk` timesteps of one LSTM layer for one batch tile.

    xp_ref  : (chunk, Bt, 4H) bf16  precomputed x@W_ih^T + bias, gates (i,f,o,g)
    w_hh_ref: (H, 4H)         bf16  recurrent weights (transposed, fused gates)
    out_ref : (chunk, Bt, H)  bf16  hidden outputs
    h_scr, c_scr : (Bt, H) f32 state carried across the sequential time axis.
    """
    H = hidden_size

    # Init keyed on the TIME axis (axis 1) so the optional batch-parallel
    # axis 0 is correct on both 1-TC and 2-TC chips.
    @pl.when(pl.program_id(1) == 0)
    def _init():
        h_scr[...] = jnp.zeros_like(h_scr)
        c_scr[...] = jnp.zeros_like(c_scr)

    w_hh = w_hh_ref[...]  # (H, 4H) bf16, loaded once per chunk

    def step(t, carry):
        h_prev, c_prev = carry
        # One fused MXU matmul per timestep: (Bt, H) @ (H, 4H) -> (Bt, 4H) f32.
        gates = (xp_ref[t].astype(jnp.float32)
                 + jnp.dot(h_prev.astype(jnp.bfloat16), w_hh,
                           preferred_element_type=jnp.float32))
        # Gate order (i, f, o, g): one lane-dense sigmoid slab + one tanh.
        sig = jax.nn.sigmoid(gates[:, :3 * H])
        i_g = sig[:, 0:H]
        f_g = sig[:, H:2 * H]
        o_g = sig[:, 2 * H:3 * H]
        g_g = jnp.tanh(gates[:, 3 * H:4 * H])
        c_new = f_g * c_prev + i_g * g_g
        h_new = o_g * jnp.tanh(c_new)
        out_ref[t] = h_new.astype(out_ref.dtype)
        return h_new, c_new

    h_fin, c_fin = lax.fori_loop(0, chunk, step, (h_scr[...], c_scr[...]),
                                 unroll=True)
    h_scr[...] = h_fin
    c_scr[...] = c_fin


def _choose_chunk(T, B, H, budget_bytes, max_chunk=64):
    """Largest time-chunk whose streaming VMEM fits the budget."""
    # Per-timestep streaming bytes (double-buffered blocks):
    #   xp  bf16: B*4H*2 * 2 buffers;  out bf16: B*H*2 * 2 buffers
    per_step = B * H * (16 + 4)
    # Resident: w_hh bf16 (assume double-buffered) + h/c f32 scratch.
    fixed = 2 * (4 * H * H * 2) + 2 * (B * H * 4)
    avail = budget_bytes - fixed
    chunk = avail // per_step if avail > 0 else 1
    return int(max(1, min(chunk, max_chunk, T)))


def lstm_layer(x, w_ih_t, w_hh_t, bias, *, max_chunk=64):
    """Run one LSTM layer over the full sequence.

    x      : (T, B, F)  f32 or bf16
    w_ih_t : (F, 4H) bf16, gate columns ordered (i, f, o, g)
    w_hh_t : (H, 4H) bf16, same column order
    bias   : (4H,)   f32, b_ih + b_hh, same order
    returns (T, B, H) bf16
    """
    T, B, F = x.shape
    H = w_hh_t.shape[0]
    budget, vmem_limit = _vmem_plan()

    # Hoisted input projection for all timesteps (no sequential dependence).
    xp = matmul_bias(x.reshape(T * B, F), w_ih_t, bias,
                     out_dtype=jnp.bfloat16, vmem_limit=vmem_limit)
    xp = xp.reshape(T, B, 4 * H)

    # Chunked recurrence: pad T to a multiple of chunk (zeros; trailing pad
    # steps only touch state that is never read back).
    chunk = _choose_chunk(T, B, H, budget, max_chunk)
    T_pad = _round_up(T, chunk)
    if T_pad != T:
        xp = jnp.pad(xp, ((0, T_pad - T), (0, 0), (0, 0)))

    # Optional 2-way batch split (near-2x on v7x's 2 TCs; harmless elsewhere).
    n_bt = 2 if (B >= 16 and B % 16 == 0) else 1
    Bt = B // n_bt
    grid = (n_bt, T_pad // chunk)

    kernel = functools.partial(_lstm_recurrent_kernel,
                               hidden_size=H, chunk=chunk)
    out = pl.pallas_call(
        kernel,
        out_shape=jax.ShapeDtypeStruct((T_pad, B, H), jnp.bfloat16),
        grid=grid,
        in_specs=[
            pl.BlockSpec((chunk, Bt, 4 * H), lambda b, c: (c, b, 0)),
            pl.BlockSpec((H, 4 * H), lambda b, c: (0, 0)),
        ],
        out_specs=pl.BlockSpec((chunk, Bt, H), lambda b, c: (c, b, 0)),
        scratch_shapes=[
            pltpu.VMEM((Bt, H), jnp.float32),  # h state
            pltpu.VMEM((Bt, H), jnp.float32),  # c state
        ],
        compiler_params=pltpu.CompilerParams(
            dimension_semantics=("parallel", "arbitrary"),
            vmem_limit_bytes=int(vmem_limit)),
    )(xp, w_hh_t)

    return out[:T] if T_pad != T else out


# ------------------------------- Full forward ---------------------------------

def linear_all_timesteps(h_all, w_t, b, vmem_limit):
    """Apply Linear(hidden_size -> output_size) to every timestep."""
    T, B, H = h_all.shape
    O = w_t.shape[1]
    y2d = matmul_bias(h_all.reshape(T * B, H), w_t, b,
                      out_dtype=jnp.float32, vmem_limit=vmem_limit)
    return y2d.reshape(T, B, O)


@jax.jit
def lstm_forward(inputs, prepped):
    """Equivalent of LSTM.forward: multi-layer LSTM then per-step Linear."""
    x = inputs
    for p in prepped["layers"]:
        x = lstm_layer(x, p["w_ih_t"], p["w_hh_t"], p["bias"])
    _, vmem_limit = _vmem_plan()
    return linear_all_timesteps(x, prepped["linear"]["w_t"],
                                prepped["linear"]["b"], vmem_limit)


# ------------------------------ parameter prep --------------------------------

def _gate_perm(H):
    ar = jnp.arange(H)
    # PyTorch order (i, f, g, o) -> kernel order (i, f, o, g)
    return jnp.concatenate([ar, ar + H, ar + 3 * H, ar + 2 * H])


def prepare_params(params, num_layers):
    """One-time prep: transpose, bf16-cast, bias fold, gate reorder."""
    layers = []
    for layer in range(num_layers):
        p = params[f"layer{layer}"]
        H = p["w_hh"].shape[1]
        perm = _gate_perm(H)
        layers.append({
            "w_ih_t": jnp.transpose(p["w_ih"][perm]).astype(jnp.bfloat16),
            "w_hh_t": jnp.transpose(p["w_hh"][perm]).astype(jnp.bfloat16),
            "bias": (p["b_ih"] + p["b_hh"])[perm].astype(jnp.float32),
        })
    return {
        "layers": layers,
        "linear": {
            "w_t": jnp.transpose(params["linear"]["w"]).astype(jnp.bfloat16),
            "b": params["linear"]["b"].astype(jnp.float32),
        },
    }


def init_params(key, input_size, hidden_size, output_size, num_layers):
    """Deterministic init mimicking PyTorch's U(-1/sqrt(H), 1/sqrt(H))."""
    params = {}
    k = 1.0 / jnp.sqrt(jnp.float32(hidden_size))
    keys = jax.random.split(key, num_layers * 4 + 2)
    ki = 0
    for layer in range(num_layers):
        in_f = input_size if layer == 0 else hidden_size
        params[f"layer{layer}"] = {
            "w_ih": jax.random.uniform(keys[ki + 0], (4 * hidden_size, in_f),
                                       jnp.float32, -k, k),
            "w_hh": jax.random.uniform(keys[ki + 1],
                                       (4 * hidden_size, hidden_size),
                                       jnp.float32, -k, k),
            "b_ih": jax.random.uniform(keys[ki + 2], (4 * hidden_size,),
                                       jnp.float32, -k, k),
            "b_hh": jax.random.uniform(keys[ki + 3], (4 * hidden_size,),
                                       jnp.float32, -k, k),
        }
        ki += 4
    params["linear"] = {
        "w": jax.random.uniform(keys[ki + 0], (output_size, hidden_size),
                                jnp.float32, -k, k),
        "b": jax.random.uniform(keys[ki + 1], (output_size,),
                                jnp.float32, -k, k),
    }
    return params


def lstm_reference(inputs, params, num_layers):
    """Pure-JAX f32 reference matching nn.LSTM + per-step Linear."""
    x = inputs
    for layer in range(num_layers):
        p = params[f"layer{layer}"]
        w_ih, w_hh = p["w_ih"], p["w_hh"]
        bias = p["b_ih"] + p["b_hh"]
        T, B, _ = x.shape
        H = w_hh.shape[1]
        h = jnp.zeros((B, H), jnp.float32)
        c = jnp.zeros((B, H), jnp.float32)
        outs = []
        for t in range(T):
            gates = x[t] @ w_ih.T + h @ w_hh.T + bias
            i_g = jax.nn.sigmoid(gates[:, :H])
            f_g = jax.nn.sigmoid(gates[:, H:2 * H])
            g_g = jnp.tanh(gates[:, 2 * H:3 * H])
            o_g = jax.nn.sigmoid(gates[:, 3 * H:])
            c = f_g * c + i_g * g_g
            h = o_g * jnp.tanh(c)
            outs.append(h)
        x = jnp.stack(outs, 0)
    return x @ params["linear"]["w"].T + params["linear"]["b"]


if __name__ == "__main__":
    # Small, forward-consistent shapes.
    seq_len, batch = 8, 4
    input_size, hidden_size, output_size, num_layers = 16, 32, 8, 2

    key = jax.random.PRNGKey(0)
    k_in, k_par = jax.random.split(key)

    inputs = jax.random.normal(k_in, (seq_len, batch, input_size), jnp.float32)
    params = init_params(k_par, input_size, hidden_size, output_size,
                         num_layers)
    prepped = prepare_params(params, num_layers)

    out = lstm_forward(inputs, prepped)
    out = jax.block_until_ready(out)

    assert out.shape == (seq_len, batch, output_size), out.shape
    assert out.dtype == jnp.float32
    assert bool(jnp.all(jnp.isfinite(out)))

    # Loose-tolerance check vs f32 reference (kernel uses bf16 MXU operands
    # and bf16 pre-activations / intermediate hidden states).
    ref = lstm_reference(inputs, params, num_layers)
    max_err = float(jnp.max(jnp.abs(out - ref)))
    assert max_err < 1e-1, f"max abs error vs reference too large: {max_err}"

    print("KERNEL_OK")
</pallas_src>

<mosaic_0001>
module attributes {stable_mosaic.version = 11 : i64} {
  func.func @_matmul_bias_kernel(%arg0: i32, %arg1: i32, %arg2: i32, %arg3: memref<32x128xbf16, #tpu.memory_space<vmem>>, %arg4: memref<128x128xbf16, #tpu.memory_space<vmem>>, %arg5: memref<1x128xf32, #tpu.memory_space<vmem>>, %arg6: memref<32x128xbf16, #tpu.memory_space<vmem>>, %arg7: memref<32x128xf32, #tpu.memory_space<vmem>>) attributes {dimension_semantics = [#tpu.dimension_semantics<parallel>, #tpu.dimension_semantics<parallel>, #tpu.dimension_semantics<arbitrary>], iteration_bounds = array<i64: 1, 1, 1>, scalar_prefetch = 0 : i64, scratch_operands = 1 : i64, tpu.core_type = #tpu.core_type<tc>, window_params = [{transform_indices = @transform_0, window_bounds = array<i64: 32, 128>}, {transform_indices = @transform_1, window_bounds = array<i64: 128, 128>}, {transform_indices = @transform_2, window_bounds = array<i64: 1, 128>}, {transform_indices = @transform_3, window_bounds = array<i64: 32, 128>}]} {
    %c0_i32 = arith.constant 0 : i32
    %0 = arith.cmpi eq, %arg2, %c0_i32 : i32
    %1 = arith.extui %0 : i1 to i32
    %c0_i32_0 = arith.constant 0 : i32
    %2 = arith.cmpi ne, %1, %c0_i32_0 : i32
    scf.if %2 {
      %cst_10 = arith.constant 0.000000e+00 : f32
      %12 = vector.broadcast %cst_10 : f32 to vector<32x128xf32>
      %c0_11 = arith.constant 0 : index
      %c0_12 = arith.constant 0 : index
      %13 = vector.load %arg7[%c0_11, %c0_12] : memref<32x128xf32, #tpu.memory_space<vmem>>, vector<32x128xf32>
      tpu.vector_store %arg7[%c0_11, %c0_12], %12 {strides = array<i32>} : memref<32x128xf32, #tpu.memory_space<vmem>>, vector<32x128xf32>,
    } else {
    }
    %c0 = arith.constant 0 : index
    %c0_1 = arith.constant 0 : index
    %3 = vector.load %arg7[%c0, %c0_1] : memref<32x128xf32, #tpu.memory_space<vmem>>, vector<32x128xf32>
    %c0_2 = arith.constant 0 : index
    %c0_3 = arith.constant 0 : index
    %4 = vector.load %arg3[%c0_2, %c0_3] : memref<32x128xbf16, #tpu.memory_space<vmem>>, vector<32x128xbf16>
    %c0_4 = arith.constant 0 : index
    %c0_5 = arith.constant 0 : index
    %5 = vector.load %arg4[%c0_4, %c0_5] : memref<128x128xbf16, #tpu.memory_space<vmem>>, vector<128x128xbf16>
    %cst = arith.constant dense<0.000000e+00> : vector<32x128xf32>
    %6 = tpu.matmul %4, %5, %cst {dimension_numbers = #tpu.dot_dimension_numbers<[1], [0], [0], [1], [0, 0, 1, 1], [], []>} : vector<32x128xbf16>, vector<128x128xbf16>, vector<32x128xf32> -> vector<32x128xf32>
    %7 = arith.addf %3, %6 : vector<32x128xf32>
    %c0_6 = arith.constant 0 : index
    %c0_7 = arith.constant 0 : index
    %8 = vector.load %arg7[%c0_6, %c0_7] : memref<32x128xf32, #tpu.memory_space<vmem>>, vector<32x128xf32>
    tpu.vector_store %arg7[%c0_6, %c0_7], %7 {strides = array<i32>} : memref<32x128xf32, #tpu.memory_space<vmem>>, vector<32x128xf32>,
    %c0_i32_8 = arith.constant 0 : i32
    %9 = arith.cmpi eq, %arg2, %c0_i32_8 : i32
    %10 = arith.extui %9 : i1 to i32
    %c0_i32_9 = arith.constant 0 : i32
    %11 = arith.cmpi ne, %10, %c0_i32_9 : i32
    scf.if %11 {
      %c0_10 = arith.constant 0 : index
      %c0_11 = arith.constant 0 : index
      %12 = vector.load %arg7[%c0_10, %c0_11] : memref<32x128xf32, #tpu.memory_space<vmem>>, vector<32x128xf32>
      %c0_12 = arith.constant 0 : index
      %c0_13 = arith.constant 0 : index
      %13 = vector.load %arg5[%c0_12, %c0_13] : memref<1x128xf32, #tpu.memory_space<vmem>>, vector<1x128xf32>
      %14 = vector.broadcast %13 : vector<1x128xf32> to vector<32x128xf32>
      %15 = arith.addf %12, %14 : vector<32x128xf32>
      %16 = arith.truncf %15 : vector<32x128xf32> to vector<32x128xbf16>
      %c0_14 = arith.constant 0 : index
      %c0_15 = arith.constant 0 : index
      %17 = vector.load %arg6[%c0_14, %c0_15] : memref<32x128xbf16, #tpu.memory_space<vmem>>, vector<32x128xbf16>
      tpu.vector_store %arg6[%c0_14, %c0_15], %16 {strides = array<i32>} : memref<32x128xbf16, #tpu.memory_space<vmem>>, vector<32x128xbf16>,
    } else {
    }
    return
  }
  func.func @transform_0(%arg0: i32, %arg1: i32, %arg2: i32) -> (i32, i32) {
    %c0_i32 = arith.constant 0 : i32
    return %arg0, %arg2 : i32, i32
  }
  func.func @transform_1(%arg0: i32, %arg1: i32, %arg2: i32) -> (i32, i32) {
    %c0_i32 = arith.constant 0 : i32
    return %arg2, %arg1 : i32, i32
  }
  func.func @transform_2(%arg0: i32, %arg1: i32, %arg2: i32) -> (i32, i32) {
    %c0_i32 = arith.constant 0 : i32
    %c0_i32_0 = arith.constant 0 : i32
    return %c0_i32, %arg1 : i32, i32
  }
  func.func @transform_3(%arg0: i32, %arg1: i32, %arg2: i32) -> (i32, i32) {
    %c0_i32 = arith.constant 0 : i32
    return %arg0, %arg1 : i32, i32
  }
}

module attributes {stable_mosaic.version = 11 : i64} {
  func.func @_matmul_bias_kernel(%arg0: i32, %arg1: i32, %arg2: i32, %arg3: memref<32x128xbf16, #tpu.memory_space<vmem>>, %arg4: memref<128x128xbf16, #tpu.memory_space<vmem>>, %arg5: memref<1x128xf32, #tpu.memory_space<vmem>>, %arg6: memref<32x128xf32, #tpu.memory_space<vmem>>, %arg7: memref<32x128xf32, #tpu.memory_space<vmem>>) attributes {dimension_semantics = [#tpu.dimension_semantics<parallel>, #tpu.dimension_semantics<parallel>, #tpu.dimension_semantics<arbitrary>], iteration_bounds = array<i64: 1, 1, 1>, scalar_prefetch = 0 : i64, scratch_operands = 1 : i64, tpu.core_type = #tpu.core_type<tc>, window_params = [{transform_indices = @transform_0, window_bounds = array<i64: 32, 128>}, {transform_indices = @transform_1, window_bounds = array<i64: 128, 128>}, {transform_indices = @transform_2, window_bounds = array<i64: 1, 128>}, {transform_indices = @transform_3, window_bounds = array<i64: 32, 128>}]} {
    %c0_i32 = arith.constant 0 : i32
    %0 = arith.cmpi eq, %arg2, %c0_i32 : i32
    %1 = arith.extui %0 : i1 to i32
    %c0_i32_0 = arith.constant 0 : i32
    %2 = arith.cmpi ne, %1, %c0_i32_0 : i32
    scf.if %2 {
      %cst_10 = arith.constant 0.000000e+00 : f32
      %12 = vector.broadcast %cst_10 : f32 to vector<32x128xf32>
      %c0_11 = arith.constant 0 : index
      %c0_12 = arith.constant 0 : index
      %13 = vector.load %arg7[%c0_11, %c0_12] : memref<32x128xf32, #tpu.memory_space<vmem>>, vector<32x128xf32>
      tpu.vector_store %arg7[%c0_11, %c0_12], %12 {strides = array<i32>} : memref<32x128xf32, #tpu.memory_space<vmem>>, vector<32x128xf32>,
    } else {
    }
    %c0 = arith.constant 0 : index
    %c0_1 = arith.constant 0 : index
    %3 = vector.load %arg7[%c0, %c0_1] : memref<32x128xf32, #tpu.memory_space<vmem>>, vector<32x128xf32>
    %c0_2 = arith.constant 0 : index
    %c0_3 = arith.constant 0 : index
    %4 = vector.load %arg3[%c0_2, %c0_3] : memref<32x128xbf16, #tpu.memory_space<vmem>>, vector<32x128xbf16>
    %c0_4 = arith.constant 0 : index
    %c0_5 = arith.constant 0 : index
    %5 = vector.load %arg4[%c0_4, %c0_5] : memref<128x128xbf16, #tpu.memory_space<vmem>>, vector<128x128xbf16>
    %cst = arith.constant dense<0.000000e+00> : vector<32x128xf32>
    %6 = tpu.matmul %4, %5, %cst {dimension_numbers = #tpu.dot_dimension_numbers<[1], [0], [0], [1], [0, 0, 1, 1], [], []>} : vector<32x128xbf16>, vector<128x128xbf16>, vector<32x128xf32> -> vector<32x128xf32>
    %7 = arith.addf %3, %6 : vector<32x128xf32>
    %c0_6 = arith.constant 0 : index
    %c0_7 = arith.constant 0 : index
    %8 = vector.load %arg7[%c0_6, %c0_7] : memref<32x128xf32, #tpu.memory_space<vmem>>, vector<32x128xf32>
    tpu.vector_store %arg7[%c0_6, %c0_7], %7 {strides = array<i32>} : memref<32x128xf32, #tpu.memory_space<vmem>>, vector<32x128xf32>,
    %c0_i32_8 = arith.constant 0 : i32
    %9 = arith.cmpi eq, %arg2, %c0_i32_8 : i32
    %10 = arith.extui %9 : i1 to i32
    %c0_i32_9 = arith.constant 0 : i32
    %11 = arith.cmpi ne, %10, %c0_i32_9 : i32
    scf.if %11 {
      %c0_10 = arith.constant 0 : index
      %c0_11 = arith.constant 0 : index
      %12 = vector.load %arg7[%c0_10, %c0_11] : memref<32x128xf32, #tpu.memory_space<vmem>>, vector<32x128xf32>
      %c0_12 = arith.constant 0 : index
      %c0_13 = arith.constant 0 : index
      %13 = vector.load %arg5[%c0_12, %c0_13] : memref<1x128xf32, #tpu.memory_space<vmem>>, vector<1x128xf32>
      %14 = vector.broadcast %13 : vector<1x128xf32> to vector<32x128xf32>
      %15 = arith.addf %12, %14 : vector<32x128xf32>
      %c0_14 = arith.constant 0 : index
      %c0_15 = arith.constant 0 : index
      %16 = vector.load %arg6[%c0_14, %c0_15] : memref<32x128xf32, #tpu.memory_space<vmem>>, vector<32x128xf32>
      tpu.vector_store %arg6[%c0_14, %c0_15], %15 {strides = array<i32>} : memref<32x128xf32, #tpu.memory_space<vmem>>, vector<32x128xf32>,
    } else {
    }
    return
  }
  func.func @transform_0(%arg0: i32, %arg1: i32, %arg2: i32) -> (i32, i32) {
    %c0_i32 = arith.constant 0 : i32
    return %arg0, %arg2 : i32, i32
  }
  func.func @transform_1(%arg0: i32, %arg1: i32, %arg2: i32) -> (i32, i32) {
    %c0_i32 = arith.constant 0 : i32
    return %arg2, %arg1 : i32, i32
  }
  func.func @transform_2(%arg0: i32, %arg1: i32, %arg2: i32) -> (i32, i32) {
    %c0_i32 = arith.constant 0 : i32
    %c0_i32_0 = arith.constant 0 : i32
    return %c0_i32, %arg1 : i32, i32
  }
  func.func @transform_3(%arg0: i32, %arg1: i32, %arg2: i32) -> (i32, i32) {
    %c0_i32 = arith.constant 0 : i32
    return %arg0, %arg1 : i32, i32
  }
}

module attributes {stable_mosaic.version = 11 : i64} {
  func.func @_lstm_recurrent_kernel(%arg0: i32, %arg1: i32, %arg2: memref<8x4x128xbf16, #tpu.memory_space<vmem>>, %arg3: memref<32x128xbf16, #tpu.memory_space<vmem>>, %arg4: memref<8x4x32xbf16, #tpu.memory_space<vmem>>, %arg5: memref<4x32xf32, #tpu.memory_space<vmem>>, %arg6: memref<4x32xf32, #tpu.memory_space<vmem>>) attributes {dimension_semantics = [#tpu.dimension_semantics<parallel>, #tpu.dimension_semantics<arbitrary>], iteration_bounds = array<i64: 1, 1>, scalar_prefetch = 0 : i64, scratch_operands = 2 : i64, tpu.core_type = #tpu.core_type<tc>, window_params = [{transform_indices = @transform_0, window_bounds = array<i64: 8, 4, 128>}, {pipeline_mode = #tpu.pipeline_mode<synchronous>, transform_indices = @transform_1, window_bounds = array<i64: 32, 128>}, {transform_indices = @transform_2, window_bounds = array<i64: 8, 4, 32>}]} {
    %c0_i32 = arith.constant 0 : i32
    %0 = arith.cmpi eq, %arg1, %c0_i32 : i32
    %1 = arith.extui %0 : i1 to i32
    %c0_i32_0 = arith.constant 0 : i32
    %2 = arith.cmpi ne, %1, %c0_i32_0 : i32
    scf.if %2 {
      %cst_58 = arith.constant 0.000000e+00 : f32
      %232 = vector.broadcast %cst_58 : f32 to vector<4x32xf32>
      %c0_59 = arith.constant 0 : index
      %c0_60 = arith.constant 0 : index
      %233 = vector.load %arg5[%c0_59, %c0_60] : memref<4x32xf32, #tpu.memory_space<vmem>>, vector<4x32xf32>
      tpu.vector_store %arg5[%c0_59, %c0_60], %232 {strides = array<i32>} : memref<4x32xf32, #tpu.memory_space<vmem>>, vector<4x32xf32>,
      %cst_61 = arith.constant 0.000000e+00 : f32
      %234 = vector.broadcast %cst_61 : f32 to vector<4x32xf32>
      %c0_62 = arith.constant 0 : index
      %c0_63 = arith.constant 0 : index
      %235 = vector.load %arg6[%c0_62, %c0_63] : memref<4x32xf32, #tpu.memory_space<vmem>>, vector<4x32xf32>
      tpu.vector_store %arg6[%c0_62, %c0_63], %234 {strides = array<i32>} : memref<4x32xf32, #tpu.memory_space<vmem>>, vector<4x32xf32>,
    } else {
    }
    %c0 = arith.constant 0 : index
    %c0_1 = arith.constant 0 : index
    %3 = vector.load %arg3[%c0, %c0_1] : memref<32x128xbf16, #tpu.memory_space<vmem>>, vector<32x128xbf16>
    %c0_2 = arith.constant 0 : index
    %c0_3 = arith.constant 0 : index
    %4 = vector.load %arg5[%c0_2, %c0_3] : memref<4x32xf32, #tpu.memory_space<vmem>>, vector<4x32xf32>
    %c0_4 = arith.constant 0 : index
    %c0_5 = arith.constant 0 : index
    %5 = vector.load %arg6[%c0_4, %c0_5] : memref<4x32xf32, #tpu.memory_space<vmem>>, vector<4x32xf32>
    %c0_i32_6 = arith.constant 0 : i32
    %6 = arith.index_cast %c0_i32_6 : i32 to index
    %c0_7 = arith.constant 0 : index
    %c0_8 = arith.constant 0 : index
    %7 = vector.load %arg2[%6, %c0_7, %c0_8] : memref<8x4x128xbf16, #tpu.memory_space<vmem>>, vector<1x4x128xbf16>
    %8 = vector.shape_cast %7 : vector<1x4x128xbf16> to vector<4x128xbf16>
    %9 = arith.extf %8 : vector<4x128xbf16> to vector<4x128xf32>
    %10 = arith.truncf %4 : vector<4x32xf32> to vector<4x32xbf16>
    %cst = arith.constant dense<0.000000e+00> : vector<4x128xf32>
    %11 = tpu.matmul %10, %3, %cst {dimension_numbers = #tpu.dot_dimension_numbers<[1], [0], [0], [1], [0, 0, 1, 1], [], []>} : vector<4x32xbf16>, vector<32x128xbf16>, vector<4x128xf32> -> vector<4x128xf32>
    %12 = arith.addf %9, %11 : vector<4x128xf32>
    %13 = vector.extract_strided_slice %12 {offsets = [0, 0], sizes = [4, 96], strides = [1, 1]} : vector<4x128xf32> to vector<4x96xf32>
    %14 = arith.negf %13 : vector<4x96xf32>
    %15 = math.exp %14 : vector<4x96xf32>
    %cst_9 = arith.constant 1.000000e+00 : f32
    %16 = vector.broadcast %cst_9 : f32 to vector<4x96xf32>
    %17 = arith.addf %16, %15 : vector<4x96xf32>
    %18 = arith.divf %16, %17 : vector<4x96xf32>
    %19 = vector.extract_strided_slice %18 {offsets = [0, 0], sizes = [4, 32], strides = [1, 1]} : vector<4x96xf32> to vector<4x32xf32>
    %20 = vector.extract_strided_slice %18 {offsets = [0, 32], sizes = [4, 32], strides = [1, 1]} : vector<4x96xf32> to vector<4x32xf32>
    %21 = vector.extract_strided_slice %18 {offsets = [0, 64], sizes = [4, 32], strides = [1, 1]} : vector<4x96xf32> to vector<4x32xf32>
    %22 = vector.extract_strided_slice %12 {offsets = [0, 96], sizes = [4, 32], strides = [1, 1]} : vector<4x128xf32> to vector<4x32xf32>
    %23 = math.tanh %22 : vector<4x32xf32>
    %24 = arith.mulf %20, %5 : vector<4x32xf32>
    %25 = arith.mulf %19, %23 : vector<4x32xf32>
    %26 = arith.addf %24, %25 : vector<4x32xf32>
    %27 = math.tanh %26 : vector<4x32xf32>
    %28 = arith.mulf %21, %27 : vector<4x32xf32>
    %29 = arith.truncf %28 : vector<4x32xf32> to vector<4x32xbf16>
    %30 = arith.index_cast %c0_i32_6 : i32 to index
    %c0_10 = arith.constant 0 : index
    %c0_11 = arith.constant 0 : index
    %31 = vector.load %arg4[%30, %c0_10, %c0_11] : memref<8x4x32xbf16, #tpu.memory_space<vmem>>, vector<1x4x32xbf16>
    %32 = vector.shape_cast %31 : vector<1x4x32xbf16> to vector<4x32xbf16>
    %33 = vector.shape_cast %29 : vector<4x32xbf16> to vector<1x4x32xbf16>
    tpu.vector_store %arg4[%30, %c0_10, %c0_11], %33 {strides = array<i32>} : memref<8x4x32xbf16, #tpu.memory_space<vmem>>, vector<1x4x32xbf16>,
    %c1_i32 = arith.constant 1 : i32
    %34 = arith.index_cast %c1_i32 : i32 to index
    %c0_12 = arith.constant 0 : index
    %c0_13 = arith.constant 0 : index
    %35 = vector.load %arg2[%34, %c0_12, %c0_13] : memref<8x4x128xbf16, #tpu.memory_space<vmem>>, vector<1x4x128xbf16>
    %36 = vector.shape_cast %35 : vector<1x4x128xbf16> to vector<4x128xbf16>
    %37 = arith.extf %36 : vector<4x128xbf16> to vector<4x128xf32>
    %38 = arith.truncf %28 : vector<4x32xf32> to vector<4x32xbf16>
    %cst_14 = arith.constant dense<0.000000e+00> : vector<4x128xf32>
    %39 = tpu.matmul %38, %3, %cst_14 {dimension_numbers = #tpu.dot_dimension_numbers<[1], [0], [0], [1], [0, 0, 1, 1], [], []>} : vector<4x32xbf16>, vector<32x128xbf16>, vector<4x128xf32> -> vector<4x128xf32>
    %40 = arith.addf %37, %39 : vector<4x128xf32>
    %41 = vector.extract_strided_slice %40 {offsets = [0, 0], sizes = [4, 96], strides = [1, 1]} : vector<4x128xf32> to vector<4x96xf32>
    %42 = arith.negf %41 : vector<4x96xf32>
    %43 = math.exp %42 : vector<4x96xf32>
    %cst_15 = arith.constant 1.000000e+00 : f32
    %44 = vector.broadcast %cst_15 : f32 to vector<4x96xf32>
    %45 = arith.addf %44, %43 : vector<4x96xf32>
    %46 = arith.divf %44, %45 : vector<4x96xf32>
    %47 = vector.extract_strided_slice %46 {offsets = [0, 0], sizes = [4, 32], strides = [1, 1]} : vector<4x96xf32> to vector<4x32xf32>
    %48 = vector.extract_strided_slice %46 {offsets = [0, 32], sizes = [4, 32], strides = [1, 1]} : vector<4x96xf32> to vector<4x32xf32>
    %49 = vector.extract_strided_slice %46 {offsets = [0, 64], sizes = [4, 32], strides = [1, 1]} : vector<4x96xf32> to vector<4x32xf32>
    %50 = vector.extract_strided_slice %40 {offsets = [0, 96], sizes = [4, 32], strides = [1, 1]} : vector<4x128xf32> to vector<4x32xf32>
    %51 = math.tanh %50 : vector<4x32xf32>
    %52 = arith.mulf %48, %26 : vector<4x32xf32>
    %53 = arith.mulf %47, %51 : vector<4x32xf32>
    %54 = arith.addf %52, %53 : vector<4x32xf32>
    %55 = math.tanh %54 : vector<4x32xf32>
    %56 = arith.mulf %49, %55 : vector<4x32xf32>
    %57 = arith.truncf %56 : vector<4x32xf32> to vector<4x32xbf16>
    %58 = arith.index_cast %c1_i32 : i32 to index
    %c0_16 = arith.constant 0 : index
    %c0_17 = arith.constant 0 : index
    %59 = vector.load %arg4[%58, %c0_16, %c0_17] : memref<8x4x32xbf16, #tpu.memory_space<vmem>>, vector<1x4x32xbf16>
    %60 = vector.shape_cast %59 : vector<1x4x32xbf16> to vector<4x32xbf16>
    %61 = vector.shape_cast %57 : vector<4x32xbf16> to vector<1x4x32xbf16>
    tpu.vector_store %arg4[%58, %c0_16, %c0_17], %61 {strides = array<i32>} : memref<8x4x32xbf16, #tpu.memory_space<vmem>>, vector<1x4x32xbf16>,
    %c2_i32 = arith.constant 2 : i32
    %62 = arith.index_cast %c2_i32 : i32 to index
    %c0_18 = arith.constant 0 : index
    %c0_19 = arith.constant 0 : index
    %63 = vector.load %arg2[%62, %c0_18, %c0_19] : memref<8x4x128xbf16, #tpu.memory_space<vmem>>, vector<1x4x128xbf16>
    %64 = vector.shape_cast %63 : vector<1x4x128xbf16> to vector<4x128xbf16>
    %65 = arith.extf %64 : vector<4x128xbf16> to vector<4x128xf32>
    %66 = arith.truncf %56 : vector<4x32xf32> to vector<4x32xbf16>
    %cst_20 = arith.constant dense<0.000000e+00> : vector<4x128xf32>
    %67 = tpu.matmul %66, %3, %cst_20 {dimension_numbers = #tpu.dot_dimension_numbers<[1], [0], [0], [1], [0, 0, 1, 1], [], []>} : vector<4x32xbf16>, vector<32x128xbf16>, vector<4x128xf32> -> vector<4x128xf32>
    %68 = arith.addf %65, %67 : vector<4x128xf32>
    %69 = vector.extract_strided_slice %68 {offsets = [0, 0], sizes = [4, 96], strides = [1, 1]} : vector<4x128xf32> to vector<4x96xf32>
    %70 = arith.negf %69 : vector<4x96xf32>
    %71 = math.exp %70 : vector<4x96xf32>
    %cst_21 = arith.constant 1.000000e+00 : f32
    %72 = vector.broadcast %cst_21 : f32 to vector<4x96xf32>
    %73 = arith.addf %72, %71 : vector<4x96xf32>
    %74 = arith.divf %72, %73 : vector<4x96xf32>
    %75 = vector.extract_strided_slice %74 {offsets = [0, 0], sizes = [4, 32], strides = [1, 1]} : vector<4x96xf32> to vector<4x32xf32>
    %76 = vector.extract_strided_slice %74 {offsets = [0, 32], sizes = [4, 32], strides = [1, 1]} : vector<4x96xf32> to vector<4x32xf32>
    %77 = vector.extract_strided_slice %74 {offsets = [0, 64], sizes = [4, 32], strides = [1, 1]} : vector<4x96xf32> to vector<4x32xf32>
    %78 = vector.extract_strided_slice %68 {offsets = [0, 96], sizes = [4, 32], strides = [1, 1]} : vector<4x128xf32> to vector<4x32xf32>
    %79 = math.tanh %78 : vector<4x32xf32>
    %80 = arith.mulf %76, %54 : vector<4x32xf32>
    %81 = arith.mulf %75, %79 : vector<4x32xf32>
    %82 = arith.addf %80, %81 : vector<4x32xf32>
    %83 = math.tanh %82 : vector<4x32xf32>
    %84 = arith.mulf %77, %83 : vector<4x32xf32>
    %85 = arith.truncf %84 : vector<4x32xf32> to vector<4x32xbf16>
    %86 = arith.index_cast %c2_i32 : i32 to index
    %c0_22 = arith.constant 0 : index
    %c0_23 = arith.constant 0 : index
    %87 = vector.load %arg4[%86, %c0_22, %c0_23] : memref<8x4x32xbf16, #tpu.memory_space<vmem>>, vector<1x4x32xbf16>
    %88 = vector.shape_cast %87 : vector<1x4x32xbf16> to vector<4x32xbf16>
    %89 = vector.shape_cast %85 : vector<4x32xbf16> to vector<1x4x32xbf16>
    tpu.vector_store %arg4[%86, %c0_22, %c0_23], %89 {strides = array<i32>} : memref<8x4x32xbf16, #tpu.memory_space<vmem>>, vector<1x4x32xbf16>,
    %c3_i32 = arith.constant 3 : i32
    %90 = arith.index_cast %c3_i32 : i32 to index
    %c0_24 = arith.constant 0 : index
    %c0_25 = arith.constant 0 : index
    %91 = vector.load %arg2[%90, %c0_24, %c0_25] : memref<8x4x128xbf16, #tpu.memory_space<vmem>>, vector<1x4x128xbf16>
    %92 = vector.shape_cast %91 : vector<1x4x128xbf16> to vector<4x128xbf16>
    %93 = arith.extf %92 : vector<4x128xbf16> to vector<4x128xf32>
    %94 = arith.truncf %84 : vector<4x32xf32> to vector<4x32xbf16>
    %cst_26 = arith.constant dense<0.000000e+00> : vector<4x128xf32>
    %95 = tpu.matmul %94, %3, %cst_26 {dimension_numbers = #tpu.dot_dimension_numbers<[1], [0], [0], [1], [0, 0, 1, 1], [], []>} : vector<4x32xbf16>, vector<32x128xbf16>, vector<4x128xf32> -> vector<4x128xf32>
    %96 = arith.addf %93, %95 : vector<4x128xf32>
    %97 = vector.extract_strided_slice %96 {offsets = [0, 0], sizes = [4, 96], strides = [1, 1]} : vector<4x128xf32> to vector<4x96xf32>
    %98 = arith.negf %97 : vector<4x96xf32>
    %99 = math.exp %98 : vector<4x96xf32>
    %cst_27 = arith.constant 1.000000e+00 : f32
    %100 = vector.broadcast %cst_27 : f32 to vector<4x96xf32>
    %101 = arith.addf %100, %99 : vector<4x96xf32>
    %102 = arith.divf %100, %101 : vector<4x96xf32>
    %103 = vector.extract_strided_slice %102 {offsets = [0, 0], sizes = [4, 32], strides = [1, 1]} : vector<4x96xf32> to vector<4x32xf32>
    %104 = vector.extract_strided_slice %102 {offsets = [0, 32], sizes = [4, 32], strides = [1, 1]} : vector<4x96xf32> to vector<4x32xf32>
    %105 = vector.extract_strided_slice %102 {offsets = [0, 64], sizes = [4, 32], strides = [1, 1]} : vector<4x96xf32> to vector<4x32xf32>
    %106 = vector.extract_strided_slice %96 {offsets = [0, 96], sizes = [4, 32], strides = [1, 1]} : vector<4x128xf32> to vector<4x32xf32>
    %107 = math.tanh %106 : vector<4x32xf32>
    %108 = arith.mulf %104, %82 : vector<4x32xf32>
    %109 = arith.mulf %103, %107 : vector<4x32xf32>
    %110 = arith.addf %108, %109 : vector<4x32xf32>
    %111 = math.tanh %110 : vector<4x32xf32>
    %112 = arith.mulf %105, %111 : vector<4x32xf32>
    %113 = arith.truncf %112 : vector<4x32xf32> to vector<4x32xbf16>
    %114 = arith.index_cast %c3_i32 : i32 to index
    %c0_28 = arith.constant 0 : index
    %c0_29 = arith.constant 0 : index
    %115 = vector.load %arg4[%114, %c0_28, %c0_29] : memref<8x4x32xbf16, #tpu.memory_space<vmem>>, vector<1x4x32xbf16>
    %116 = vector.shape_cast %115 : vector<1x4x32xbf16> to vector<4x32xbf16>
    %117 = vector.shape_cast %113 : vector<4x32xbf16> to vector<1x4x32xbf16>
    tpu.vector_store %arg4[%114, %c0_28, %c0_29], %117 {strides = array<i32>} : memref<8x4x32xbf16, #tpu.memory_space<vmem>>, vector<1x4x32xbf16>,
    %c4_i32 = arith.constant 4 : i32
    %118 = arith.index_cast %c4_i32 : i32 to index
    %c0_30 = arith.constant 0 : index
    %c0_31 = arith.constant 0 : index
    %119 = vector.load %arg2[%118, %c0_30, %c0_31] : memref<8x4x128xbf16, #tpu.memory_space<vmem>>, vector<1x4x128xbf16>
    %120 = vector.shape_cast %119 : vector<1x4x128xbf16> to vector<4x128xbf16>
    %121 = arith.extf %120 : vector<4x128xbf16> to vector<4x128xf32>
    %122 = arith.truncf %112 : vector<4x32xf32> to vector<4x32xbf16>
    %cst_32 = arith.constant dense<0.000000e+00> : vector<4x128xf32>
    %123 = tpu.matmul %122, %3, %cst_32 {dimension_numbers = #tpu.dot_dimension_numbers<[1], [0], [0], [1], [0, 0, 1, 1], [], []>} : vector<4x32xbf16>, vector<32x128xbf16>, vector<4x128xf32> -> vector<4x128xf32>
    %124 = arith.addf %121, %123 : vector<4x128xf32>
    %125 = vector.extract_strided_slice %124 {offsets = [0, 0], sizes = [4, 96], strides = [1, 1]} : vector<4x128xf32> to vector<4x96xf32>
    %126 = arith.negf %125 : vector<4x96xf32>
    %127 = math.exp %126 : vector<4x96xf32>
    %cst_33 = arith.constant 1.000000e+00 : f32
    %128 = vector.broadcast %cst_33 : f32 to vector<4x96xf32>
    %129 = arith.addf %128, %127 : vector<4x96xf32>
    %130 = arith.divf %128, %129 : vector<4x96xf32>
    %131 = vector.extract_strided_slice %130 {offsets = [0, 0], sizes = [4, 32], strides = [1, 1]} : vector<4x96xf32> to vector<4x32xf32>
    %132 = vector.extract_strided_slice %130 {offsets = [0, 32], sizes = [4, 32], strides = [1, 1]} : vector<4x96xf32> to vector<4x32xf32>
    %133 = vector.extract_strided_slice %130 {offsets = [0, 64], sizes = [4, 32], strides = [1, 1]} : vector<4x96xf32> to vector<4x32xf32>
    %134 = vector.extract_strided_slice %124 {offsets = [0, 96], sizes = [4, 32], strides = [1, 1]} : vector<4x128xf32> to vector<4x32xf32>
    %135 = math.tanh %134 : vector<4x32xf32>
    %136 = arith.mulf %132, %110 : vector<4x32xf32>
    %137 = arith.mulf %131, %135 : vector<4x32xf32>
    %138 = arith.addf %136, %137 : vector<4x32xf32>
    %139 = math.tanh %138 : vector<4x32xf32>
    %140 = arith.mulf %133, %139 : vector<4x32xf32>
    %141 = arith.truncf %140 : vector<4x32xf32> to vector<4x32xbf16>
    %142 = arith.index_cast %c4_i32 : i32 to index
    %c0_34 = arith.constant 0 : index
    %c0_35 = arith.constant 0 : index
    %143 = vector.load %arg4[%142, %c0_34, %c0_35] : memref<8x4x32xbf16, #tpu.memory_space<vmem>>, vector<1x4x32xbf16>
    %144 = vector.shape_cast %143 : vector<1x4x32xbf16> to vector<4x32xbf16>
    %145 = vector.shape_cast %141 : vector<4x32xbf16> to vector<1x4x32xbf16>
    tpu.vector_store %arg4[%142, %c0_34, %c0_35], %145 {strides = array<i32>} : memref<8x4x32xbf16, #tpu.memory_space<vmem>>, vector<1x4x32xbf16>,
    %c5_i32 = arith.constant 5 : i32
    %146 = arith.index_cast %c5_i32 : i32 to index
    %c0_36 = arith.constant 0 : index
    %c0_37 = arith.constant 0 : index
    %147 = vector.load %arg2[%146, %c0_36, %c0_37] : memref<8x4x128xbf16, #tpu.memory_space<vmem>>, vector<1x4x128xbf16>
    %148 = vector.shape_cast %147 : vector<1x4x128xbf16> to vector<4x128xbf16>
    %149 = arith.extf %148 : vector<4x128xbf16> to vector<4x128xf32>
    %150 = arith.truncf %140 : vector<4x32xf32> to vector<4x32xbf16>
    %cst_38 = arith.constant dense<0.000000e+00> : vector<4x128xf32>
    %151 = tpu.matmul %150, %3, %cst_38 {dimension_numbers = #tpu.dot_dimension_numbers<[1], [0], [0], [1], [0, 0, 1, 1], [], []>} : vector<4x32xbf16>, vector<32x128xbf16>, vector<4x128xf32> -> vector<4x128xf32>
    %152 = arith.addf %149, %151 : vector<4x128xf32>
    %153 = vector.extract_strided_slice %152 {offsets = [0, 0], sizes = [4, 96], strides = [1, 1]} : vector<4x128xf32> to vector<4x96xf32>
    %154 = arith.negf %153 : vector<4x96xf32>
    %155 = math.exp %154 : vector<4x96xf32>
    %cst_39 = arith.constant 1.000000e+00 : f32
    %156 = vector.broadcast %cst_39 : f32 to vector<4x96xf32>
    %157 = arith.addf %156, %155 : vector<4x96xf32>
    %158 = arith.divf %156, %157 : vector<4x96xf32>
    %159 = vector.extract_strided_slice %158 {offsets = [0, 0], sizes = [4, 32], strides = [1, 1]} : vector<4x96xf32> to vector<4x32xf32>
    %160 = vector.extract_strided_slice %158 {offsets = [0, 32], sizes = [4, 32], strides = [1, 1]} : vector<4x96xf32> to vector<4x32xf32>
    %161 = vector.extract_strided_slice %158 {offsets = [0, 64], sizes = [4, 32], strides = [1, 1]} : vector<4x96xf32> to vector<4x32xf32>
    %162 = vector.extract_strided_slice %152 {offsets = [0, 96], sizes = [4, 32], strides = [1, 1]} : vector<4x128xf32> to vector<4x32xf32>
    %163 = math.tanh %162 : vector<4x32xf32>
    %164 = arith.mulf %160, %138 : vector<4x32xf32>
    %165 = arith.mulf %159, %163 : vector<4x32xf32>
    %166 = arith.addf %164, %165 : vector<4x32xf32>
    %167 = math.tanh %166 : vector<4x32xf32>
    %168 = arith.mulf %161, %167 : vector<4x32xf32>
    %169 = arith.truncf %168 : vector<4x32xf32> to vector<4x32xbf16>
    %170 = arith.index_cast %c5_i32 : i32 to index
    %c0_40 = arith.constant 0 : index
    %c0_41 = arith.constant 0 : index
    %171 = vector.load %arg4[%170, %c0_40, %c0_41] : memref<8x4x32xbf16, #tpu.memory_space<vmem>>, vector<1x4x32xbf16>
    %172 = vector.shape_cast %171 : vector<1x4x32xbf16> to vector<4x32xbf16>
    %173 = vector.shape_cast %169 : vector<4x32xbf16> to vector<1x4x32xbf16>
    tpu.vector_store %arg4[%170, %c0_40, %c0_41], %173 {strides = array<i32>} : memref<8x4x32xbf16, #tpu.memory_space<vmem>>, vector<1x4x32xbf16>,
    %c6_i32 = arith.constant 6 : i32
    %174 = arith.index_cast %c6_i32 : i32 to index
    %c0_42 = arith.constant 0 : index
    %c0_43 = arith.constant 0 : index
    %175 = vector.load %arg2[%174, %c0_42, %c0_43] : memref<8x4x128xbf16, #tpu.memory_space<vmem>>, vector<1x4x128xbf16>
    %176 = vector.shape_cast %175 : vector<1x4x128xbf16> to vector<4x128xbf16>
    %177 = arith.extf %176 : vector<4x128xbf16> to vector<4x128xf32>
    %178 = arith.truncf %168 : vector<4x32xf32> to vector<4x32xbf16>
    %cst_44 = arith.constant dense<0.000000e+00> : vector<4x128xf32>
    %179 = tpu.matmul %178, %3, %cst_44 {dimension_numbers = #tpu.dot_dimension_numbers<[1], [0], [0], [1], [0, 0, 1, 1], [], []>} : vector<4x32xbf16>, vector<32x128xbf16>, vector<4x128xf32> -> vector<4x128xf32>
    %180 = arith.addf %177, %179 : vector<4x128xf32>
    %181 = vector.extract_strided_slice %180 {offsets = [0, 0], sizes = [4, 96], strides = [1, 1]} : vector<4x128xf32> to vector<4x96xf32>
    %182 = arith.negf %181 : vector<4x96xf32>
    %183 = math.exp %182 : vector<4x96xf32>
    %cst_45 = arith.constant 1.000000e+00 : f32
    %184 = vector.broadcast %cst_45 : f32 to vector<4x96xf32>
    %185 = arith.addf %184, %183 : vector<4x96xf32>
    %186 = arith.divf %184, %185 : vector<4x96xf32>
    %187 = vector.extract_strided_slice %186 {offsets = [0, 0], sizes = [4, 32], strides = [1, 1]} : vector<4x96xf32> to vector<4x32xf32>
    %188 = vector.extract_strided_slice %186 {offsets = [0, 32], sizes = [4, 32], strides = [1, 1]} : vector<4x96xf32> to vector<4x32xf32>
    %189 = vector.extract_strided_slice %186 {offsets = [0, 64], sizes = [4, 32], strides = [1, 1]} : vector<4x96xf32> to vector<4x32xf32>
    %190 = vector.extract_strided_slice %180 {offsets = [0, 96], sizes = [4, 32], strides = [1, 1]} : vector<4x128xf32> to vector<4x32xf32>
    %191 = math.tanh %190 : vector<4x32xf32>
    %192 = arith.mulf %188, %166 : vector<4x32xf32>
    %193 = arith.mulf %187, %191 : vector<4x32xf32>
    %194 = arith.addf %192, %193 : vector<4x32xf32>
    %195 = math.tanh %194 : vector<4x32xf32>
    %196 = arith.mulf %189, %195 : vector<4x32xf32>
    %197 = arith.truncf %196 : vector<4x32xf32> to vector<4x32xbf16>
    %198 = arith.index_cast %c6_i32 : i32 to index
    %c0_46 = arith.constant 0 : index
    %c0_47 = arith.constant 0 : index
    %199 = vector.load %arg4[%198, %c0_46, %c0_47] : memref<8x4x32xbf16, #tpu.memory_space<vmem>>, vector<1x4x32xbf16>
    %200 = vector.shape_cast %199 : vector<1x4x32xbf16> to vector<4x32xbf16>
    %201 = vector.shape_cast %197 : vector<4x32xbf16> to vector<1x4x32xbf16>
    tpu.vector_store %arg4[%198, %c0_46, %c0_47], %201 {strides = array<i32>} : memref<8x4x32xbf16, #tpu.memory_space<vmem>>, vector<1x4x32xbf16>,
    %c7_i32 = arith.constant 7 : i32
    %202 = arith.index_cast %c7_i32 : i32 to index
    %c0_48 = arith.constant 0 : index
    %c0_49 = arith.constant 0 : index
    %203 = vector.load %arg2[%202, %c0_48, %c0_49] : memref<8x4x128xbf16, #tpu.memory_space<vmem>>, vector<1x4x128xbf16>
    %204 = vector.shape_cast %203 : vector<1x4x128xbf16> to vector<4x128xbf16>
    %205 = arith.extf %204 : vector<4x128xbf16> to vector<4x128xf32>
    %206 = arith.truncf %196 : vector<4x32xf32> to vector<4x32xbf16>
    %cst_50 = arith.constant dense<0.000000e+00> : vector<4x128xf32>
    %207 = tpu.matmul %206, %3, %cst_50 {dimension_numbers = #tpu.dot_dimension_numbers<[1], [0], [0], [1], [0, 0, 1, 1], [], []>} : vector<4x32xbf16>, vector<32x128xbf16>, vector<4x128xf32> -> vector<4x128xf32>
    %208 = arith.addf %205, %207 : vector<4x128xf32>
    %209 = vector.extract_strided_slice %208 {offsets = [0, 0], sizes = [4, 96], strides = [1, 1]} : vector<4x128xf32> to vector<4x96xf32>
    %210 = arith.negf %209 : vector<4x96xf32>
    %211 = math.exp %210 : vector<4x96xf32>
    %cst_51 = arith.constant 1.000000e+00 : f32
    %212 = vector.broadcast %cst_51 : f32 to vector<4x96xf32>
    %213 = arith.addf %212, %211 : vector<4x96xf32>
    %214 = arith.divf %212, %213 : vector<4x96xf32>
    %215 = vector.extract_strided_slice %214 {offsets = [0, 0], sizes = [4, 32], strides = [1, 1]} : vector<4x96xf32> to vector<4x32xf32>
    %216 = vector.extract_strided_slice %214 {offsets = [0, 32], sizes = [4, 32], strides = [1, 1]} : vector<4x96xf32> to vector<4x32xf32>
    %217 = vector.extract_strided_slice %214 {offsets = [0, 64], sizes = [4, 32], strides = [1, 1]} : vector<4x96xf32> to vector<4x32xf32>
    %218 = vector.extract_strided_slice %208 {offsets = [0, 96], sizes = [4, 32], strides = [1, 1]} : vector<4x128xf32> to vector<4x32xf32>
    %219 = math.tanh %218 : vector<4x32xf32>
    %220 = arith.mulf %216, %194 : vector<4x32xf32>
    %221 = arith.mulf %215, %219 : vector<4x32xf32>
    %222 = arith.addf %220, %221 : vector<4x32xf32>
    %223 = math.tanh %222 : vector<4x32xf32>
    %224 = arith.mulf %217, %223 : vector<4x32xf32>
    %225 = arith.truncf %224 : vector<4x32xf32> to vector<4x32xbf16>
    %226 = arith.index_cast %c7_i32 : i32 to index
    %c0_52 = arith.constant 0 : index
    %c0_53 = arith.constant 0 : index
    %227 = vector.load %arg4[%226, %c0_52, %c0_53] : memref<8x4x32xbf16, #tpu.memory_space<vmem>>, vector<1x4x32xbf16>
    %228 = vector.shape_cast %227 : vector<1x4x32xbf16> to vector<4x32xbf16>
    %229 = vector.shape_cast %225 : vector<4x32xbf16> to vector<1x4x32xbf16>
    tpu.vector_store %arg4[%226, %c0_52, %c0_53], %229 {strides = array<i32>} : memref<8x4x32xbf16, #tpu.memory_space<vmem>>, vector<1x4x32xbf16>,
    %c8_i32 = arith.constant 8 : i32
    %c0_54 = arith.constant 0 : index
    %c0_55 = arith.constant 0 : index
    %230 = vector.load %arg5[%c0_54, %c0_55] : memref<4x32xf32, #tpu.memory_space<vmem>>, vector<4x32xf32>
    tpu.vector_store %arg5[%c0_54, %c0_55], %224 {strides = array<i32>} : memref<4x32xf32, #tpu.memory_space<vmem>>, vector<4x32xf32>,
    %c0_56 = arith.constant 0 : index
    %c0_57 = arith.constant 0 : index
    %231 = vector.load %arg6[%c0_56, %c0_57] : memref<4x32xf32, #tpu.memory_space<vmem>>, vector<4x32xf32>
    tpu.vector_store %arg6[%c0_56, %c0_57], %222 {strides = array<i32>} : memref<4x32xf32, #tpu.memory_space<vmem>>, vector<4x32xf32>,
    return
  }
  func.func @transform_0(%arg0: i32, %arg1: i32) -> (i32, i32, i32) {
    %c0_i32 = arith.constant 0 : i32
    %c0_i32_0 = arith.constant 0 : i32
    return %arg1, %arg0, %c0_i32 : i32, i32, i32
  }
  func.func @transform_1(%arg0: i32, %arg1: i32) -> (i32, i32) {
    %c0_i32 = arith.constant 0 : i32
    %c0_i32_0 = arith.constant 0 : i32
    %c0_i32_1 = arith.constant 0 : i32
    return %c0_i32, %c0_i32_0 : i32, i32
  }
  func.func @transform_2(%arg0: i32, %arg1: i32) -> (i32, i32, i32) {
    %c0_i32 = arith.constant 0 : i32
    %c0_i32_0 = arith.constant 0 : i32
    return %arg1, %arg0, %c0_i32 : i32, i32, i32
  }
}

</mosaic_0001>

<llo_original>
// kernel: lstm_forward.5
$region0: #{lstm_forward.5}
  #allocation0 [shape = 'u32[]', space=smem, size = 0x4, offset = 0x4, fixed_abs, tag = 'smem constant byte address 0x4 - core index']
  #allocation1 [shape = 'u32[144,128]{1,0:T(1,128)}', space=vmem, size = 0x12000, scoped, tag = 'internal scratch']
  #allocation2 [shape = 'f32[32,128]{1,0:T(8,128)}', space=vmem, size = 0x4000, scoped, tag = 'scratch operand']
  %s0 = inlined_call_operand.vmem [shape: bf16[32,128], index: 0, kind: input, shape index: {}]
  %s1 = inlined_call_operand.vmem [shape: bf16[128,128], index: 1, kind: input, shape index: {}]
  %s2 = inlined_call_operand.vmem [shape: f32[1,128], index: 2, kind: input, shape index: {}]
  %s3 = inlined_call_operand.vmem [shape: bf16[32,128], index: 3, kind: output, shape index: {}]
  %s4 = sld [smem:[#allocation0]]
  $region30: #{lstm_forward.5} parent=0
    _
  %s6 = ssub.s32 1, %s4
  %s7 = scalar_select 0, %s6, %s4
  // Predicated region
  $region2: #{lstm_forward.5} parent=0 // pred_check
    _
  $region3: #{lstm_forward.5} parent=0 // pred_check_branch
    %9 = sbr.rel (0) target = $region5
  $region4: #{lstm_forward.5} parent=0 // pred_region
    _
  $region5: #{lstm_forward.5} parent=0 // pred_fallthru
    _
  // Predicated region
  $region6: #{lstm_forward.5} parent=0 // pred_check
    _
  $region7: #{lstm_forward.5} parent=0 // pred_check_branch
    %11 = sbr.rel (0) target = $region9
  $region8: #{lstm_forward.5} parent=0 // pred_region
    _
  $region9: #{lstm_forward.5} parent=0 // pred_fallthru
    _
  // Predicated region
  $region10: #{lstm_forward.5} parent=0 // pred_check
    _
  $region11: #{lstm_forward.5} parent=0 // pred_check_branch
    %13 = sbr.rel (0) target = $region13
  $region12: #{lstm_forward.5} parent=0 // pred_region
    _
  $region13: #{lstm_forward.5} parent=0 // pred_fallthru
    _
  %p15 = scmp.eq.s32.totalorder 0, 0
  // Predicated region
  $region14: #{lstm_forward.5} parent=0 // pred_check
    %p16 = pneg %p15
  $region15: #{lstm_forward.5} parent=0 // pred_check_branch
    %18 = sbr.rel (%p16) target = $region17
  $region16: #{lstm_forward.5} parent=0 // pred_region
    %19 = vst [vmem:[#allocation2] sm:$0xff] 0.0
    %20 = vst [vmem:[#allocation2 + $0x8] sm:$0xff] 0.0
    %21 = vst [vmem:[#allocation2 + $0x10] sm:$0xff] 0.0
    %22 = vst [vmem:[#allocation2 + $0x18] sm:$0xff] 0.0
  $region17: #{lstm_forward.5} parent=0 // pred_fallthru
    _
  %v23 = vld [vmem:[#allocation2] sm:$0xff]
  %v24 = vld [vmem:[#allocation2 + $0x8] sm:$0xff]
  %v25 = vld [vmem:[#allocation2 + $0x10] sm:$0xff]
  %v26 = vld [vmem:[#allocation2 + $0x18] sm:$0xff]
  %v27 = vld [vmem:[%s0] sm:$0xf]
  %v28 = vld [vmem:[%s0 + $0x4] sm:$0xf]
  %v29 = vld [vmem:[%s0 + $0x8] sm:$0xf]
  %v30 = vld [vmem:[%s0 + $0xc] sm:$0xf]
  %v31 = vld [vmem:[%s1] sm:$0xf]
  %v32 = vld [vmem:[%s1 + $0x4] sm:$0xf]
  %v33 = vld [vmem:[%s1 + $0x8] sm:$0xf]
  %v34 = vld [vmem:[%s1 + $0xc] sm:$0xf]
  %v35 = vld [vmem:[%s1 + $0x10] sm:$0xf]
  %v36 = vld [vmem:[%s1 + $0x14] sm:$0xf]
  %v37 = vld [vmem:[%s1 + $0x18] sm:$0xf]
  %v38 = vld [vmem:[%s1 + $0x1c] sm:$0xf]
  %v39 = vld [vmem:[%s1 + $0x20] sm:$0xf]
  %v40 = vld [vmem:[%s1 + $0x24] sm:$0xf]
  %v41 = vld [vmem:[%s1 + $0x28] sm:$0xf]
  %v42 = vld [vmem:[%s1 + $0x2c] sm:$0xf]
  %v43 = vld [vmem:[%s1 + $0x30] sm:$0xf]
  %v44 = vld [vmem:[%s1 + $0x34] sm:$0xf]
  %v45 = vld [vmem:[%s1 + $0x38] sm:$0xf]
  %v46 = vld [vmem:[%s1 + $0x3c] sm:$0xf]
  %v51 = vunpack.c.l.b16 %v27
  %v52 = vunpack.c.l.b16 %v28
  %v53 = vunpack.c.l.b16 %v29
  %v54 = vunpack.c.l.b16 %v30
  %v55 = vpack.c.b16 %v52, %v51
  %v56 = vpack.c.b16 %v54, %v53
  %v75 = vunpack.c.l.b16 %v31
  %v76 = vunpack.c.l.b16 %v32
  %v77 = vunpack.c.l.b16 %v33
  %v78 = vunpack.c.l.b16 %v34
  %v79 = vunpack.c.l.b16 %v35
  %v80 = vunpack.c.l.b16 %v36
  %v81 = vunpack.c.l.b16 %v37
  %v82 = vunpack.c.l.b16 %v38
  %v83 = vunpack.c.l.b16 %v39
  %v84 = vunpack.c.l.b16 %v40
  %v85 = vunpack.c.l.b16 %v41
  %v86 = vunpack.c.l.b16 %v42
  %v87 = vunpack.c.l.b16 %v43
  %v88 = vunpack.c.l.b16 %v44
  %v89 = vunpack.c.l.b16 %v45
  %v90 = vunpack.c.l.b16 %v46
  %v91 = vpack.c.b16 %v76, %v75
  %v92 = vpack.c.b16 %v78, %v77
  %v93 = vpack.c.b16 %v80, %v79
  %v94 = vpack.c.b16 %v82, %v81
  %v95 = vpack.c.b16 %v84, %v83
  %v96 = vpack.c.b16 %v86, %v85
  %v97 = vpack.c.b16 %v88, %v87
  %v98 = vpack.c.b16 %v90, %v89
  %107 = vmatprep.subr.bf16.mxu0 0
  %108 = vmatpush1.bf16.msra.mxu0 %v98
  %109 = vmatprep.subr.bf16.mxu0 0
  %110 = vmatpush1.bf16.msra.mxu0 %v97
  %111 = vmatprep.subr.bf16.mxu0 0
  %112 = vmatpush1.bf16.msra.mxu0 %v96
  %113 = vmatprep.subr.bf16.mxu0 0
  %114 = vmatpush1.bf16.msra.mxu0 %v95
  %115 = vmatprep.subr.bf16.mxu0 0
  %116 = vmatpush1.bf16.msra.mxu0 %v94
  %117 = vmatprep.subr.bf16.mxu0 0
  %118 = vmatpush1.bf16.msra.mxu0 %v93
  %119 = vmatprep.subr.bf16.mxu0 0
  %120 = vmatpush1.bf16.msra.mxu0 %v92
  %121 = vmatprep.subr.bf16.mxu0 0
  %122 = vmatpush1.bf16.msra.mxu0 %v91
  %123 = vmatprep.subr.bf16.mxu0 0
  %124 = vmatpush2.bf16.msra.mxu0 0
  %125 = vmatprep.subr.bf16.mxu0 0
  %126 = vmatpush2.bf16.msra.mxu0 0
  %127 = vmatprep.subr.bf16.mxu0 0
  %128 = vmatpush2.bf16.msra.mxu0 0
  %129 = vmatprep.subr.bf16.mxu0 0
  %130 = vmatpush2.bf16.msra.mxu0 0
  %131 = vmatprep.subr.bf16.mxu0 0
  %132 = vmatpush2.bf16.msra.mxu0 0
  %133 = vmatprep.subr.bf16.mxu0 0
  %134 = vmatpush2.bf16.msra.mxu0 0
  %135 = vmatprep.subr.bf16.mxu0 0
  %136 = vmatpush2.bf16.msra.mxu0 0
  %137 = vmatprep.subr.bf16.mxu0 0
  %138 = vmatpush2.bf16.msra.mxu0 0
  %139 = vmatprep.mubr.bf16.mxu0 0
  %140 = vmatmul.mubr.bf16.gmra.mxu0 %v55
  %v141 = vpop.f32.mrf.mxu0
  %v142 = vadd.f32 0.0, %v141
  %v143 = vpop.f32.mrf.mxu0
  %v144 = vpop.f32.mrf.mxu0
  %v145 = vadd.f32 0.0, %v144
  %v146 = vpop.f32.mrf.mxu0
  %147 = vmatprep.mubr.bf16.mxu0 0
  %148 = vmatmul.mubr.bf16.gmra.mxu0 %v56
  %v149 = vpop.f32.mrf.mxu0
  %v150 = vadd.f32 0.0, %v149
  %v151 = vpop.f32.mrf.mxu0
  %v152 = vpop.f32.mrf.mxu0
  %v153 = vadd.f32 0.0, %v152
  %v154 = vpop.f32.mrf.mxu0
  %155 = vdwg.mxu0
  %v156 = vadd.f32 %v23, %v142
  %v157 = vadd.f32 %v24, %v145
  %v158 = vadd.f32 %v25, %v150
  %v159 = vadd.f32 %v26, %v153
  %160 = vst [vmem:[#allocation2] sm:$0xff] %v156
  %161 = vst [vmem:[#allocation2 + $0x8] sm:$0xff] %v157
  %162 = vst [vmem:[#allocation2 + $0x10] sm:$0xff] %v158
  %163 = vst [vmem:[#allocation2 + $0x18] sm:$0xff] %v159
  // Predicated region
  $region18: #{lstm_forward.5} parent=0 // pred_check
    %p164 = pneg %p15
  $region19: #{lstm_forward.5} parent=0 // pred_check_branch
    %166 = sbr.rel (%p164) target = $region21
  $region20: #{lstm_forward.5} parent=0 // pred_region
    %v167 = vld [vmem:[#allocation2] sm:$0xff]
    %v168 = vld [vmem:[#allocation2 + $0x8] sm:$0xff]
    %v169 = vld [vmem:[#allocation2 + $0x10] sm:$0xff]
    %v170 = vld [vmem:[#allocation2 + $0x18] sm:$0xff]
    %v171 = vld [vmem:[%s2] sm:$0x1]
    %v173 = vlaneseq
    %v174 = vshrl.u32 %v173, 7
    %v175 = vsub.s32 0, %v174
    %v176 = vrot.slane %v171, %v175
    %v178 = vadd.f32 %v167, %v176
    %v179 = vadd.f32 %v168, %v176
    %v180 = vadd.f32 %v169, %v176
    %v181 = vadd.f32 %v170, %v176
    %v182 = vpack.c.bf16 %v179, %v178
    %v183 = vpack.c.bf16 %v181, %v180
    %v186 = vunpack.c.l.b16 %v182
    %v187 = vunpack.c.h.b16 %v182
    %v188 = vunpack.c.l.b16 %v183
    %v189 = vunpack.c.h.b16 %v183
    %v190 = vpack.c.b16 %v186, %v186
    %v191 = vpack.c.b16 %v187, %v187
    %v192 = vpack.c.b16 %v188, %v188
    %v193 = vpack.c.b16 %v189, %v189
    %198 = vst [vmem:[%s3] sm:$0xf] %v190
    %199 = vst [vmem:[%s3 + $0x4] sm:$0xf] %v191
    %200 = vst [vmem:[%s3 + $0x8] sm:$0xf] %v192
    %201 = vst [vmem:[%s3 + $0xc] sm:$0xf] %v193
  $region21: #{lstm_forward.5} parent=0 // pred_fallthru
    _
  // Predicated region
  $region22: #{lstm_forward.5} parent=0 // pred_check
    _
  $region23: #{lstm_forward.5} parent=0 // pred_check_branch
    %203 = sbr.rel (0) target = $region25
  $region24: #{lstm_forward.5} parent=0 // pred_region
    _
  $region25: #{lstm_forward.5} parent=0 // pred_fallthru
    _
  // Predicated region
  $region26: #{lstm_forward.5} parent=0 // pred_check
    _
  $region27: #{lstm_forward.5} parent=0 // pred_check_branch
    %205 = sbr.rel (0) target = $region29
  $region28: #{lstm_forward.5} parent=0 // pred_region
    _
  $region29: #{lstm_forward.5} parent=0 // pred_fallthru
    _

// kernel: lstm_forward.9
$region0: #{lstm_forward.9}
  #allocation0 [shape = 'u32[]', space=smem, size = 0x4, offset = 0x4, fixed_abs, tag = 'smem constant byte address 0x4 - core index']
  #allocation1 [shape = 'u32[144,128]{1,0:T(1,128)}', space=vmem, size = 0x12000, scoped, tag = 'internal scratch']
  #allocation2 [shape = 'f32[32,128]{1,0:T(8,128)}', space=vmem, size = 0x4000, scoped, tag = 'scratch operand']
  %s0 = inlined_call_operand.vmem [shape: bf16[32,128], index: 0, kind: input, shape index: {}]
  %s1 = inlined_call_operand.vmem [shape: bf16[128,128], index: 1, kind: input, shape index: {}]
  %s2 = inlined_call_operand.vmem [shape: f32[1,128], index: 2, kind: input, shape index: {}]
  %s3 = inlined_call_operand.hbm [shape: f32[32,128], index: 3, kind: output, shape index: {}]
  %s4 = sld [smem:[#allocation0]]
  $region30: #{lstm_forward.9} parent=0
    _
  %s6 = ssub.s32 1, %s4
  %s7 = scalar_select 0, %s6, %s4
  $region1: #{lstm_forward.9} parent=0
    #allocation3 [shape = 'u8[16384]{0}', space=vmem, size = 0x4000, scoped, tag = 'output window, operand 0, single buffered']
    #allocation4 [shape = 's32[1]{0}', space=sflag, size = 0x4, scoped, tag = 'scoped memory for lstm_forward.9']
    %8 = vsyncpa [#allocation4], 0
    // Predicated region
    $region2: #{lstm_forward.9} parent=1 // pred_check
      _
    $region3: #{lstm_forward.9} parent=1 // pred_check_branch
      %10 = sbr.rel (0) target = $region5
    $region4: #{lstm_forward.9} parent=1 // pred_region
      _
    $region5: #{lstm_forward.9} parent=1 // pred_fallthru
      _
    // Predicated region
    $region6: #{lstm_forward.9} parent=1 // pred_check
      _
    $region7: #{lstm_forward.9} parent=1 // pred_check_branch
      %12 = sbr.rel (0) target = $region9
    $region8: #{lstm_forward.9} parent=1 // pred_region
      _
    $region9: #{lstm_forward.9} parent=1 // pred_fallthru
      _
    // Predicated region
    $region10: #{lstm_forward.9} parent=1 // pred_check
      _
    $region11: #{lstm_forward.9} parent=1 // pred_check_branch
      %14 = sbr.rel (0) target = $region13
    $region12: #{lstm_forward.9} parent=1 // pred_region
      _
    $region13: #{lstm_forward.9} parent=1 // pred_fallthru
      _
    %p16 = scmp.eq.s32.totalorder 0, 0
    // Predicated region
    $region14: #{lstm_forward.9} parent=1 // pred_check
      %p17 = pneg %p16
    $region15: #{lstm_forward.9} parent=1 // pred_check_branch
      %19 = sbr.rel (%p17) target = $region17
    $region16: #{lstm_forward.9} parent=1 // pred_region
      %20 = vst [vmem:[#allocation2] sm:$0xff] 0.0
      %21 = vst [vmem:[#allocation2 + $0x8] sm:$0xff] 0.0
      %22 = vst [vmem:[#allocation2 + $0x10] sm:$0xff] 0.0
      %23 = vst [vmem:[#allocation2 + $0x18] sm:$0xff] 0.0
    $region17: #{lstm_forward.9} parent=1 // pred_fallthru
      _
    %v24 = vld [vmem:[#allocation2] sm:$0xff]
    %v25 = vld [vmem:[#allocation2 + $0x8] sm:$0xff]
    %v26 = vld [vmem:[#allocation2 + $0x10] sm:$0xff]
    %v27 = vld [vmem:[#allocation2 + $0x18] sm:$0xff]
    %v28 = vld [vmem:[%s0] sm:$0xf]
    %v29 = vld [vmem:[%s0 + $0x4] sm:$0xf]
    %v30 = vld [vmem:[%s0 + $0x8] sm:$0xf]
    %v31 = vld [vmem:[%s0 + $0xc] sm:$0xf]
    %v32 = vld [vmem:[%s1] sm:$0xf]
    %v33 = vld [vmem:[%s1 + $0x4] sm:$0xf]
    %v34 = vld [vmem:[%s1 + $0x8] sm:$0xf]
    %v35 = vld [vmem:[%s1 + $0xc] sm:$0xf]
    %v36 = vld [vmem:[%s1 + $0x10] sm:$0xf]
    %v37 = vld [vmem:[%s1 + $0x14] sm:$0xf]
    %v38 = vld [vmem:[%s1 + $0x18] sm:$0xf]
    %v39 = vld [vmem:[%s1 + $0x1c] sm:$0xf]
    %v40 = vld [vmem:[%s1 + $0x20] sm:$0xf]
    %v41 = vld [vmem:[%s1 + $0x24] sm:$0xf]
    %v42 = vld [vmem:[%s1 + $0x28] sm:$0xf]
    %v43 = vld [vmem:[%s1 + $0x2c] sm:$0xf]
    %v44 = vld [vmem:[%s1 + $0x30] sm:$0xf]
    %v45 = vld [vmem:[%s1 + $0x34] sm:$0xf]
    %v46 = vld [vmem:[%s1 + $0x38] sm:$0xf]
    %v47 = vld [vmem:[%s1 + $0x3c] sm:$0xf]
    %v52 = vunpack.c.l.b16 %v28
    %v53 = vunpack.c.l.b16 %v29
    %v54 = vunpack.c.l.b16 %v30
    %v55 = vunpack.c.l.b16 %v31
    %v56 = vpack.c.b16 %v53, %v52
    %v57 = vpack.c.b16 %v55, %v54
    %v76 = vunpack.c.l.b16 %v32
    %v77 = vunpack.c.l.b16 %v33
    %v78 = vunpack.c.l.b16 %v34
    %v79 = vunpack.c.l.b16 %v35
    %v80 = vunpack.c.l.b16 %v36
    %v81 = vunpack.c.l.b16 %v37
    %v82 = vunpack.c.l.b16 %v38
    %v83 = vunpack.c.l.b16 %v39
    %v84 = vunpack.c.l.b16 %v40
    %v85 = vunpack.c.l.b16 %v41
    %v86 = vunpack.c.l.b16 %v42
    %v87 = vunpack.c.l.b16 %v43
    %v88 = vunpack.c.l.b16 %v44
    %v89 = vunpack.c.l.b16 %v45
    %v90 = vunpack.c.l.b16 %v46
    %v91 = vunpack.c.l.b16 %v47
    %v92 = vpack.c.b16 %v77, %v76
    %v93 = vpack.c.b16 %v79, %v78
    %v94 = vpack.c.b16 %v81, %v80
    %v95 = vpack.c.b16 %v83, %v82
    %v96 = vpack.c.b16 %v85, %v84
    %v97 = vpack.c.b16 %v87, %v86
    %v98 = vpack.c.b16 %v89, %v88
    %v99 = vpack.c.b16 %v91, %v90
    %108 = vmatprep.subr.bf16.mxu0 0
    %109 = vmatpush1.bf16.msra.mxu0 %v99
    %110 = vmatprep.subr.bf16.mxu0 0
    %111 = vmatpush1.bf16.msra.mxu0 %v98
    %112 = vmatprep.subr.bf16.mxu0 0
    %113 = vmatpush1.bf16.msra.mxu0 %v97
    %114 = vmatprep.subr.bf16.mxu0 0
    %115 = vmatpush1.bf16.msra.mxu0 %v96
    %116 = vmatprep.subr.bf16.mxu0 0
    %117 = vmatpush1.bf16.msra.mxu0 %v95
    %118 = vmatprep.subr.bf16.mxu0 0
    %119 = vmatpush1.bf16.msra.mxu0 %v94
    %120 = vmatprep.subr.bf16.mxu0 0
    %121 = vmatpush1.bf16.msra.mxu0 %v93
    %122 = vmatprep.subr.bf16.mxu0 0
    %123 = vmatpush1.bf16.msra.mxu0 %v92
    %124 = vmatprep.subr.bf16.mxu0 0
    %125 = vmatpush2.bf16.msra.mxu0 0
    %126 = vmatprep.subr.bf16.mxu0 0
    %127 = vmatpush2.bf16.msra.mxu0 0
    %128 = vmatprep.subr.bf16.mxu0 0
    %129 = vmatpush2.bf16.msra.mxu0 0
    %130 = vmatprep.subr.bf16.mxu0 0
    %131 = vmatpush2.bf16.msra.mxu0 0
    %132 = vmatprep.subr.bf16.mxu0 0
    %133 = vmatpush2.bf16.msra.mxu0 0
    %134 = vmatprep.subr.bf16.mxu0 0
    %135 = vmatpush2.bf16.msra.mxu0 0
    %136 = vmatprep.subr.bf16.mxu0 0
    %137 = vmatpush2.bf16.msra.mxu0 0
    %138 = vmatprep.subr.bf16.mxu0 0
    %139 = vmatpush2.bf16.msra.mxu0 0
    %140 = vmatprep.mubr.bf16.mxu0 0
    %141 = vmatmul.mubr.bf16.gmra.mxu0 %v56
    %v142 = vpop.f32.mrf.mxu0
    %v143 = vadd.f32 0.0, %v142
    %v144 = vpop.f32.mrf.mxu0
    %v145 = vpop.f32.mrf.mxu0
    %v146 = vadd.f32 0.0, %v145
    %v147 = vpop.f32.mrf.mxu0
    %148 = vmatprep.mubr.bf16.mxu0 0
    %149 = vmatmul.mubr.bf16.gmra.mxu0 %v57
    %v150 = vpop.f32.mrf.mxu0
    %v151 = vadd.f32 0.0, %v150
    %v152 = vpop.f32.mrf.mxu0
    %v153 = vpop.f32.mrf.mxu0
    %v154 = vadd.f32 0.0, %v153
    %v155 = vpop.f32.mrf.mxu0
    %156 = vdwg.mxu0
    %v157 = vadd.f32 %v24, %v143
    %v158 = vadd.f32 %v25, %v146
    %v159 = vadd.f32 %v26, %v151
    %v160 = vadd.f32 %v27, %v154
    %161 = vst [vmem:[#allocation2] sm:$0xff] %v157
    %162 = vst [vmem:[#allocation2 + $0x8] sm:$0xff] %v158
    %163 = vst [vmem:[#allocation2 + $0x10] sm:$0xff] %v159
    %164 = vst [vmem:[#allocation2 + $0x18] sm:$0xff] %v160
    // Predicated region
    $region18: #{lstm_forward.9} parent=1 // pred_check
      %p165 = pneg %p16
    $region19: #{lstm_forward.9} parent=1 // pred_check_branch
      %167 = sbr.rel (%p165) target = $region21
    $region20: #{lstm_forward.9} parent=1 // pred_region
      %v168 = vld [vmem:[#allocation2] sm:$0xff]
      %v169 = vld [vmem:[#allocation2 + $0x8] sm:$0xff]
      %v170 = vld [vmem:[#allocation2 + $0x10] sm:$0xff]
      %v171 = vld [vmem:[#allocation2 + $0x18] sm:$0xff]
      %v172 = vld [vmem:[%s2] sm:$0x1]
      %v174 = vlaneseq
      %v175 = vshrl.u32 %v174, 7
      %v176 = vsub.s32 0, %v175
      %v177 = vrot.slane %v172, %v176
      %v179 = vadd.f32 %v168, %v177
      %v180 = vadd.f32 %v169, %v177
      %v181 = vadd.f32 %v170, %v177
      %v182 = vadd.f32 %v171, %v177
      %183 = vst [vmem:[#allocation3] sm:$0xff] %v179
      %184 = vst [vmem:[#allocation3 + $0x8] sm:$0xff] %v180
      %185 = vst [vmem:[#allocation3 + $0x10] sm:$0xff] %v181
      %186 = vst [vmem:[#allocation3 + $0x18] sm:$0xff] %v182
    $region21: #{lstm_forward.9} parent=1 // pred_fallthru
      _
    // Predicated region
    $region22: #{lstm_forward.9} parent=1 // pred_check
      _
    $region23: #{lstm_forward.9} parent=1 // pred_check_branch
      %188 = sbr.rel (0) target = $region25
    $region24: #{lstm_forward.9} parent=1 // pred_region
      %s190 = ssub.s32 512, 512
      %191 = vsyncadd [#allocation4], %s190
      %s192 = sshll.u32 [#allocation3], 4
      %s193 = int_to_ptr.vmem [resolvable:$true] %s192
      %198 = dma.vmem_to_hbm [thread:$0]  %s193, 512, %s3, [#allocation4], 128, 128, 8
    $region25: #{lstm_forward.9} parent=1 // pred_fallthru
      _
    // Predicated region
    $region26: #{lstm_forward.9} parent=1 // pred_check
      _
    $region27: #{lstm_forward.9} parent=1 // pred_check_branch
      %200 = sbr.rel (0) target = $region29
    $region28: #{lstm_forward.9} parent=1 // pred_region
      %201 = dma.done [#allocation4], 512
    $region29: #{lstm_forward.9} parent=1 // pred_fallthru
      _
    %202 = vsyncpa [#allocation4], 1

// kernel: lstm_forward.6
$region0: #{lstm_forward.6}
  #allocation0 [shape = 'u32[]', space=smem, size = 0x4, offset = 0x4, fixed_abs, tag = 'smem constant byte address 0x4 - core index']
  #allocation1 [shape = 'u32[144,128]{1,0:T(1,128)}', space=vmem, size = 0x12000, scoped, tag = 'internal scratch']
  #allocation2 [shape = 'f32[4,32]{1,0:T(4,128)}', space=vmem, size = 0x800, scoped, tag = 'scratch operand']
  #allocation3 [shape = 'f32[4,32]{1,0:T(4,128)}', space=vmem, size = 0x800, scoped, tag = 'scratch operand']
  %s0 = inlined_call_operand.vmem [shape: bf16[8,4,128], index: 0, kind: input, shape index: {}]
  %s1 = inlined_call_operand.vmem [shape: bf16[32,128], index: 1, kind: input, shape index: {}]
  %s2 = inlined_call_operand.vmem [shape: bf16[8,4,32], index: 2, kind: output, shape index: {}]
  %s3 = sld [smem:[#allocation0]]
  $region22: #{lstm_forward.6} parent=0
    _
  %s5 = ssub.s32 1, %s3
  %s6 = scalar_select 0, %s5, %s3
  // Predicated region
  $region2: #{lstm_forward.6} parent=0 // pred_check
    _
  $region3: #{lstm_forward.6} parent=0 // pred_check_branch
    %8 = sbr.rel (0) target = $region5
  $region4: #{lstm_forward.6} parent=0 // pred_region
    _
  $region5: #{lstm_forward.6} parent=0 // pred_fallthru
    _
  // Predicated region
  $region6: #{lstm_forward.6} parent=0 // pred_check
    _
  $region7: #{lstm_forward.6} parent=0 // pred_check_branch
    %10 = sbr.rel (0) target = $region9
  $region8: #{lstm_forward.6} parent=0 // pred_region
    _
  $region9: #{lstm_forward.6} parent=0 // pred_fallthru
    _
  %p12 = scmp.eq.s32.totalorder 0, 0
  // Predicated region
  $region10: #{lstm_forward.6} parent=0 // pred_check
    %p13 = pneg %p12
  $region11: #{lstm_forward.6} parent=0 // pred_check_branch
    %15 = sbr.rel (%p13) target = $region13
  $region12: #{lstm_forward.6} parent=0 // pred_region
    %vm16 = vcmask 257024
    %17 = vst.msk [vmem:[#allocation2] sm:$0xf] %vm16, 0.0
    %18 = vst.msk [vmem:[#allocation3] sm:$0xf] %vm16, 0.0
  $region13: #{lstm_forward.6} parent=0 // pred_fallthru
    _
  %v19 = vld [vmem:[%s1] sm:$0xf]
  %v20 = vld [vmem:[%s1 + $0x4] sm:$0xf]
  %v21 = vld [vmem:[%s1 + $0x8] sm:$0xf]
  %v22 = vld [vmem:[%s1 + $0xc] sm:$0xf]
  %v23 = vld [vmem:[#allocation2] sm:$0xf]
  %v24 = vld [vmem:[#allocation3] sm:$0xf]
  %v25 = vld [vmem:[%s0] sm:$0x3]
  %v26 = vunpack.c.l.bf16 %v25
  %v27 = vpack.c.bf16 %v23, %v23
  %v32 = vunpack.c.l.b16 %v19
  %v33 = vunpack.c.l.b16 %v20
  %v34 = vunpack.c.l.b16 %v21
  %v35 = vunpack.c.l.b16 %v22
  %v36 = vpack.c.b16 %v33, %v32
  %v37 = vpack.c.b16 %v35, %v34
  %vm40 = vcmask 261120
  %v42 = vsel %vm40, %v27, 0
  %44 = vmatprep.subr.bf16.mxu0 0
  %45 = vmatpush1.bf16.msra.mxu0 0
  %46 = vmatprep.subr.bf16.mxu0 0
  %47 = vmatpush1.bf16.msra.mxu0 0
  %48 = vmatprep.subr.bf16.mxu0 0
  %49 = vmatpush1.bf16.msra.mxu0 0
  %50 = vmatprep.subr.bf16.mxu0 0
  %51 = vmatpush1.bf16.msra.mxu0 0
  %52 = vmatprep.subr.bf16.mxu0 0
  %53 = vmatpush1.bf16.msra.mxu0 0
  %54 = vmatprep.subr.bf16.mxu0 0
  %55 = vmatpush1.bf16.msra.mxu0 0
  %56 = vmatprep.subr.bf16.mxu0 0
  %57 = vmatpush1.bf16.msra.mxu0 %v37
  %58 = vmatprep.subr.bf16.mxu0 0
  %59 = vmatpush1.bf16.msra.mxu0 %v36
  %60 = vmatprep.subr.bf16.mxu0 0
  %61 = vmatpush2.bf16.msra.mxu0 0
  %62 = vmatprep.subr.bf16.mxu0 0
  %63 = vmatpush2.bf16.msra.mxu0 0
  %64 = vmatprep.subr.bf16.mxu0 0
  %65 = vmatpush2.bf16.msra.mxu0 0
  %66 = vmatprep.subr.bf16.mxu0 0
  %67 = vmatpush2.bf16.msra.mxu0 0
  %68 = vmatprep.subr.bf16.mxu0 0
  %69 = vmatpush2.bf16.msra.mxu0 0
  %70 = vmatprep.subr.bf16.mxu0 0
  %71 = vmatpush2.bf16.msra.mxu0 0
  %72 = vmatprep.subr.bf16.mxu0 0
  %73 = vmatpush2.bf16.msra.mxu0 0
  %74 = vmatprep.subr.bf16.mxu0 0
  %75 = vmatpush2.bf16.msra.mxu0 0
  %76 = vmatprep.mubr.bf16.mxu0 0
  %77 = vmatmul.mubr.bf16.gmra.mxu0 %v42
  %v78 = vpop.f32.mrf.mxu0
  %v79 = vadd.f32 0.0, %v78
  %v80 = vpop.f32.mrf.mxu0
  %v81 = vpop.f32.mrf.mxu0
  %v82 = vpop.f32.mrf.mxu0
  %83 = vdwg.mxu0
  %v84 = vadd.f32 %v26, %v79
  %v85 = vxor.u32 %v84, 2147483648
  %v86 = vmul.f32 %v85, 1.442695
  %v87 = vpow.pop %v86
  %v88 = vadd.f32 %v87, 1.0
  %v89 = vrcp.pop %v88
  %v90 = vmul.f32 1.0, %v89
  %v91 = vtanh.pop %v84
  %93 = vrot.lane.b32.xlu0 %v24, 32
  %v94 = vpop.permute.xlu0 %93
  %v96 = vmul.f32 %v90, %v94
  %98 = vrot.lane.b32.xlu0 %v91, 32
  %v99 = vpop.permute.xlu0 %98
  %v101 = vmul.f32 %v90, %v99
  %103 = vrot.lane.b32.xlu0 %v101, 32
  %v104 = vpop.permute.xlu0 %103
  %v106 = vadd.f32 %v96, %v104
  %v107 = vtanh.pop %v106
  %109 = vrot.lane.b32.xlu0 %v107, 32
  %v110 = vpop.permute.xlu0 %109
  %v112 = vmul.f32 %v90, %v110
  %v113 = vpack.c.bf16 %v112, %v112
  %v116 = vunpack.c.l.s4 1983009808
  %v117 = vunpack.c.0.s8 %v116
  %v118 = vlaneseq
  %v119 = vshrl.u32 %v118, 7
  %v120 = vsub.s32 %v117, %v119
  %v121 = vrot.slane %v113, %v120
  %122 = vrot.lane.b32.xlu0 %v121, 64
  %v123 = vpop.permute.xlu0 %122
  %vm125 = vcmask 254976
  %126 = vst.msk [vmem:[%s2] sm:$0x3] %vm125, %v123
  %s127 = scalar_lea.vmem %s0, 2
  %v128 = vld [vmem:[%s127] sm:$0x3]
  %v129 = vunpack.c.l.bf16 %v128
  %130 = vrot.lane.b32.xlu0 %v113, 64
  %v131 = vpop.permute.xlu0 %130
  %v133 = vsel %vm40, %v131, 0
  %135 = vmatprep.subr.bf16.mxu0 0
  %136 = vmatpush1.bf16.msra.mxu0 0
  %137 = vmatprep.subr.bf16.mxu0 0
  %138 = vmatpush1.bf16.msra.mxu0 0
  %139 = vmatprep.subr.bf16.mxu0 0
  %140 = vmatpush1.bf16.msra.mxu0 0
  %141 = vmatprep.subr.bf16.mxu0 0
  %142 = vmatpush1.bf16.msra.mxu0 0
  %143 = vmatprep.subr.bf16.mxu0 0
  %144 = vmatpush1.bf16.msra.mxu0 0
  %145 = vmatprep.subr.bf16.mxu0 0
  %146 = vmatpush1.bf16.msra.mxu0 0
  %147 = vmatprep.subr.bf16.mxu0 0
  %148 = vmatpush1.bf16.msra.mxu0 %v37
  %149 = vmatprep.subr.bf16.mxu0 0
  %150 = vmatpush1.bf16.msra.mxu0 %v36
  %151 = vmatprep.subr.bf16.mxu0 0
  %152 = vmatpush2.bf16.msra.mxu0 0
  %153 = vmatprep.subr.bf16.mxu0 0
  %154 = vmatpush2.bf16.msra.mxu0 0
  %155 = vmatprep.subr.bf16.mxu0 0
  %156 = vmatpush2.bf16.msra.mxu0 0
  %157 = vmatprep.subr.bf16.mxu0 0
  %158 = vmatpush2.bf16.msra.mxu0 0
  %159 = vmatprep.subr.bf16.mxu0 0
  %160 = vmatpush2.bf16.msra.mxu0 0
  %161 = vmatprep.subr.bf16.mxu0 0
  %162 = vmatpush2.bf16.msra.mxu0 0
  %163 = vmatprep.subr.bf16.mxu0 0
  %164 = vmatpush2.bf16.msra.mxu0 0
  %165 = vmatprep.subr.bf16.mxu0 0
  %166 = vmatpush2.bf16.msra.mxu0 0
  %167 = vmatprep.mubr.bf16.mxu0 0
  %168 = vmatmul.mubr.bf16.gmra.mxu0 %v133
  %v169 = vpop.f32.mrf.mxu0
  %v170 = vadd.f32 0.0, %v169
  %v171 = vpop.f32.mrf.mxu0
  %v172 = vpop.f32.mrf.mxu0
  %v173 = vpop.f32.mrf.mxu0
  %174 = vdwg.mxu0
  %v175 = vadd.f32 %v129, %v170
  %v176 = vxor.u32 %v175, 2147483648
  %v177 = vmul.f32 %v176, 1.442695
  %v178 = vpow.pop %v177
  %v179 = vadd.f32 %v178, 1.0
  %v180 = vrcp.pop %v179
  %v181 = vmul.f32 1.0, %v180
  %v182 = vtanh.pop %v175
  %v183 = vmul.f32 %v181, %v106
  %185 = vrot.lane.b32.xlu0 %v182, 32
  %v186 = vpop.permute.xlu0 %185
  %v188 = vmul.f32 %v181, %v186
  %190 = vrot.lane.b32.xlu0 %v188, 32
  %v191 = vpop.permute.xlu0 %190
  %v193 = vadd.f32 %v183, %v191
  %v194 = vtanh.pop %v193
  %196 = vrot.lane.b32.xlu0 %v194, 32
  %v197 = vpop.permute.xlu0 %196
  %v199 = vmul.f32 %v181, %v197
  %v200 = vpack.c.bf16 %v199, %v199
  %v203 = vunpack.c.l.s4 1983009808
  %v204 = vunpack.c.0.s8 %v203
  %v205 = vlaneseq
  %v206 = vshrl.u32 %v205, 7
  %v207 = vsub.s32 %v204, %v206
  %v208 = vrot.slane %v200, %v207
  %209 = vrot.lane.b32.xlu0 %v208, 64
  %v210 = vpop.permute.xlu0 %209
  %s212 = scalar_lea.vmem %s2, 2
  %213 = vst.msk [vmem:[%s212] sm:$0x3] %vm125, %v210
  %s214 = scalar_lea.vmem %s0, 4
  %v215 = vld [vmem:[%s214] sm:$0x3]
  %v216 = vunpack.c.l.bf16 %v215
  %217 = vrot.lane.b32.xlu0 %v200, 64
  %v218 = vpop.permute.xlu0 %217
  %v220 = vsel %vm40, %v218, 0
  %222 = vmatprep.subr.bf16.mxu0 0
  %223 = vmatpush1.bf16.msra.mxu0 0
  %224 = vmatprep.subr.bf16.mxu0 0
  %225 = vmatpush1.bf16.msra.mxu0 0
  %226 = vmatprep.subr.bf16.mxu0 0
  %227 = vmatpush1.bf16.msra.mxu0 0
  %228 = vmatprep.subr.bf16.mxu0 0
  %229 = vmatpush1.bf16.msra.mxu0 0
  %230 = vmatprep.subr.bf16.mxu0 0
  %231 = vmatpush1.bf16.msra.mxu0 0
  %232 = vmatprep.subr.bf16.mxu0 0
  %233 = vmatpush1.bf16.msra.mxu0 0
  %234 = vmatprep.subr.bf16.mxu0 0
  %235 = vmatpush1.bf16.msra.mxu0 %v37
  %236 = vmatprep.subr.bf16.mxu0 0
  %237 = vmatpush1.bf16.msra.mxu0 %v36
  %238 = vmatprep.subr.bf16.mxu0 0
  %239 = vmatpush2.bf16.msra.mxu0 0
  %240 = vmatprep.subr.bf16.mxu0 0
  %241 = vmatpush2.bf16.msra.mxu0 0
  %242 = vmatprep.subr.bf16.mxu0 0
  %243 = vmatpush2.bf16.msra.mxu0 0
  %244 = vmatprep.subr.bf16.mxu0 0
  %245 = vmatpush2.bf16.msra.mxu0 0
  %246 = vmatprep.subr.bf16.mxu0 0
  %247 = vmatpush2.bf16.msra.mxu0 0
  %248 = vmatprep.subr.bf16.mxu0 0
  %249 = vmatpush2.bf16.msra.mxu0 0
  %250 = vmatprep.subr.bf16.mxu0 0
  %251 = vmatpush2.bf16.msra.mxu0 0
  %252 = vmatprep.subr.bf16.mxu0 0
  %253 = vmatpush2.bf16.msra.mxu0 0
  %254 = vmatprep.mubr.bf16.mxu0 0
  %255 = vmatmul.mubr.bf16.gmra.mxu0 %v220
  %v256 = vpop.f32.mrf.mxu0
  %v257 = vadd.f32 0.0, %v256
  %v258 = vpop.f32.mrf.mxu0
  %v259 = vpop.f32.mrf.mxu0
  %v260 = vpop.f32.mrf.mxu0
  %261 = vdwg.mxu0
  %v262 = vadd.f32 %v216, %v257
  %v263 = vxor.u32 %v262, 2147483648
  %v264 = vmul.f32 %v263, 1.442695
  %v265 = vpow.pop %v264
  %v266 = vadd.f32 %v265, 1.0
  %v267 = vrcp.pop %v266
  %v268 = vmul.f32 1.0, %v267
  %v269 = vtanh.pop %v262
  %v270 = vmul.f32 %v268, %v193
  %272 = vrot.lane.b32.xlu0 %v269, 32
  %v273 = vpop.permute.xlu0 %272
  %v275 = vmul.f32 %v268, %v273
  %277 = vrot.lane.b32.xlu0 %v275, 32
  %v278 = vpop.permute.xlu0 %277
  %v280 = vadd.f32 %v270, %v278
  %v281 = vtanh.pop %v280
  %283 = vrot.lane.b32.xlu0 %v281, 32
  %v284 = vpop.permute.xlu0 %283
  %v286 = vmul.f32 %v268, %v284
  %v287 = vpack.c.bf16 %v286, %v286
  %v290 = vunpack.c.l.s4 1983009808
  %v291 = vunpack.c.0.s8 %v290
  %v292 = vlaneseq
  %v293 = vshrl.u32 %v292, 7
  %v294 = vsub.s32 %v291, %v293
  %v295 = vrot.slane %v287, %v294
  %296 = vrot.lane.b32.xlu0 %v295, 64
  %v297 = vpop.permute.xlu0 %296
  %s299 = scalar_lea.vmem %s2, 4
  %300 = vst.msk [vmem:[%s299] sm:$0x3] %vm125, %v297
  %s301 = scalar_lea.vmem %s0, 6
  %v302 = vld [vmem:[%s301] sm:$0x3]
  %v303 = vunpack.c.l.bf16 %v302
  %304 = vrot.lane.b32.xlu0 %v287, 64
  %v305 = vpop.permute.xlu0 %304
  %v307 = vsel %vm40, %v305, 0
  %309 = vmatprep.subr.bf16.mxu0 0
  %310 = vmatpush1.bf16.msra.mxu0 0
  %311 = vmatprep.subr.bf16.mxu0 0
  %312 = vmatpush1.bf16.msra.mxu0 0
  %313 = vmatprep.subr.bf16.mxu0 0
  %314 = vmatpush1.bf16.msra.mxu0 0
  %315 = vmatprep.subr.bf16.mxu0 0
  %316 = vmatpush1.bf16.msra.mxu0 0
  %317 = vmatprep.subr.bf16.mxu0 0
  %318 = vmatpush1.bf16.msra.mxu0 0
  %319 = vmatprep.subr.bf16.mxu0 0
  %320 = vmatpush1.bf16.msra.mxu0 0
  %321 = vmatprep.subr.bf16.mxu0 0
  %322 = vmatpush1.bf16.msra.mxu0 %v37
  %323 = vmatprep.subr.bf16.mxu0 0
  %324 = vmatpush1.bf16.msra.mxu0 %v36
  %325 = vmatprep.subr.bf16.mxu0 0
  %326 = vmatpush2.bf16.msra.mxu0 0
  %327 = vmatprep.subr.bf16.mxu0 0
  %328 = vmatpush2.bf16.msra.mxu0 0
  %329 = vmatprep.subr.bf16.mxu0 0
  %330 = vmatpush2.bf16.msra.mxu0 0
  %331 = vmatprep.subr.bf16.mxu0 0
  %332 = vmatpush2.bf16.msra.mxu0 0
  %333 = vmatprep.subr.bf16.mxu0 0
  %334 = vmatpush2.bf16.msra.mxu0 0
  %335 = vmatprep.subr.bf16.mxu0 0
  %336 = vmatpush2.bf16.msra.mxu0 0
  %337 = vmatprep.subr.bf16.mxu0 0
  %338 = vmatpush2.bf16.msra.mxu0 0
  %339 = vmatprep.subr.bf16.mxu0 0
  %340 = vmatpush2.bf16.msra.mxu0 0
  %341 = vmatprep.mubr.bf16.mxu0 0
  %342 = vmatmul.mubr.bf16.gmra.mxu0 %v307
  %v343 = vpop.f32.mrf.mxu0
  %v344 = vadd.f32 0.0, %v343
  %v345 = vpop.f32.mrf.mxu0
  %v346 = vpop.f32.mrf.mxu0
  %v347 = vpop.f32.mrf.mxu0
  %348 = vdwg.mxu0
  %v349 = vadd.f32 %v303, %v344
  %v350 = vxor.u32 %v349, 2147483648
  %v351 = vmul.f32 %v350, 1.442695
  %v352 = vpow.pop %v351
  %v353 = vadd.f32 %v352, 1.0
  %v354 = vrcp.pop %v353
  %v355 = vmul.f32 1.0, %v354
  %v356 = vtanh.pop %v349
  %v357 = vmul.f32 %v355, %v280
  %359 = vrot.lane.b32.xlu0 %v356, 32
  %v360 = vpop.permute.xlu0 %359
  %v362 = vmul.f32 %v355, %v360
  %364 = vrot.lane.b32.xlu0 %v362, 32
  %v365 = vpop.permute.xlu0 %364
  %v367 = vadd.f32 %v357, %v365
  %v368 = vtanh.pop %v367
  %370 = vrot.lane.b32.xlu0 %v368, 32
  %v371 = vpop.permute.xlu0 %370
  %v373 = vmul.f32 %v355, %v371
  %v374 = vpack.c.bf16 %v373, %v373
  %v377 = vunpack.c.l.s4 1983009808
  %v378 = vunpack.c.0.s8 %v377
  %v379 = vlaneseq
  %v380 = vshrl.u32 %v379, 7
  %v381 = vsub.s32 %v378, %v380
  %v382 = vrot.slane %v374, %v381
  %383 = vrot.lane.b32.xlu0 %v382, 64
  %v384 = vpop.permute.xlu0 %383
  %s386 = scalar_lea.vmem %s2, 6
  %387 = vst.msk [vmem:[%s386] sm:$0x3] %vm125, %v384
  %s388 = scalar_lea.vmem %s0, 8
  %v389 = vld [vmem:[%s388] sm:$0x3]
  %v390 = vunpack.c.l.bf16 %v389
  %391 = vrot.lane.b32.xlu0 %v374, 64
  %v392 = vpop.permute.xlu0 %391
  %v394 = vsel %vm40, %v392, 0
  %396 = vmatprep.subr.bf16.mxu0 0
  %397 = vmatpush1.bf16.msra.mxu0 0
  %398 = vmatprep.subr.bf16.mxu0 0
  %399 = vmatpush1.bf16.msra.mxu0 0
  %400 = vmatprep.subr.bf16.mxu0 0
  %401 = vmatpush1.bf16.msra.mxu0 0
  %402 = vmatprep.subr.bf16.mxu0 0
  %403 = vmatpush1.bf16.msra.mxu0 0
  %404 = vmatprep.subr.bf16.mxu0 0
  %405 = vmatpush1.bf16.msra.mxu0 0
  %406 = vmatprep.subr.bf16.mxu0 0
  %407 = vmatpush1.bf16.msra.mxu0 0
  %408 = vmatprep.subr.bf16.mxu0 0
  %409 = vmatpush1.bf16.msra.mxu0 %v37
  %410 = vmatprep.subr.bf16.mxu0 0
  %411 = vmatpush1.bf16.msra.mxu0 %v36
  %412 = vmatprep.subr.bf16.mxu0 0
  %413 = vmatpush2.bf16.msra.mxu0 0
  %414 = vmatprep.subr.bf16.mxu0 0
  %415 = vmatpush2.bf16.msra.mxu0 0
  %416 = vmatprep.subr.bf16.mxu0 0
  %417 = vmatpush2.bf16.msra.mxu0 0
  %418 = vmatprep.subr.bf16.mxu0 0
  %419 = vmatpush2.bf16.msra.mxu0 0
  %420 = vmatprep.subr.bf16.mxu0 0
  %421 = vmatpush2.bf16.msra.mxu0 0
  %422 = vmatprep.subr.bf16.mxu0 0
  %423 = vmatpush2.bf16.msra.mxu0 0
  %424 = vmatprep.subr.bf16.mxu0 0
  %425 = vmatpush2.bf16.msra.mxu0 0
  %426 = vmatprep.subr.bf16.mxu0 0
  %427 = vmatpush2.bf16.msra.mxu0 0
  %428 = vmatprep.mubr.bf16.mxu0 0
  %429 = vmatmul.mubr.bf16.gmra.mxu0 %v394
  %v430 = vpop.f32.mrf.mxu0
  %v431 = vadd.f32 0.0, %v430
  %v432 = vpop.f32.mrf.mxu0
  %v433 = vpop.f32.mrf.mxu0
  %v434 = vpop.f32.mrf.mxu0
  %435 = vdwg.mxu0
  %v436 = vadd.f32 %v390, %v431
  %v437 = vxor.u32 %v436, 2147483648
  %v438 = vmul.f32 %v437, 1.442695
  %v439 = vpow.pop %v438
  %v440 = vadd.f32 %v439, 1.0
  %v441 = vrcp.pop %v440
  %v442 = vmul.f32 1.0, %v441
  %v443 = vtanh.pop %v436
  %v444 = vmul.f32 %v442, %v367
  %446 = vrot.lane.b32.xlu0 %v443, 32
  %v447 = vpop.permute.xlu0 %446
  %v449 = vmul.f32 %v442, %v447
  %451 = vrot.lane.b32.xlu0 %v449, 32
  %v452 = vpop.permute.xlu0 %451
  %v454 = vadd.f32 %v444, %v452
  %v455 = vtanh.pop %v454
  %457 = vrot.lane.b32.xlu0 %v455, 32
  %v458 = vpop.permute.xlu0 %457
  %v460 = vmul.f32 %v442, %v458
  %v461 = vpack.c.bf16 %v460, %v460
  %v464 = vunpack.c.l.s4 1983009808
  %v465 = vunpack.c.0.s8 %v464
  %v466 = vlaneseq
  %v467 = vshrl.u32 %v466, 7
  %v468 = vsub.s32 %v465, %v467
  %v469 = vrot.slane %v461, %v468
  %470 = vrot.lane.b32.xlu0 %v469, 64
  %v471 = vpop.permute.xlu0 %470
  %s473 = scalar_lea.vmem %s2, 8
  %474 = vst.msk [vmem:[%s473] sm:$0x3] %vm125, %v471
  %s475 = scalar_lea.vmem %s0, 10
  %v476 = vld [vmem:[%s475] sm:$0x3]
  %v477 = vunpack.c.l.bf16 %v476
  %478 = vrot.lane.b32.xlu0 %v461, 64
  %v479 = vpop.permute.xlu0 %478
  %v481 = vsel %vm40, %v479, 0
  %483 = vmatprep.subr.bf16.mxu0 0
  %484 = vmatpush1.bf16.msra.mxu0 0
  %485 = vmatprep.subr.bf16.mxu0 0
  %486 = vmatpush1.bf16.msra.mxu0 0
  %487 = vmatprep.subr.bf16.mxu0 0
  %488 = vmatpush1.bf16.msra.mxu0 0
  %489 = vmatprep.subr.bf16.mxu0 0
  %490 = vmatpush1.bf16.msra.mxu0 0
  %491 = vmatprep.subr.bf16.mxu0 0
  %492 = vmatpush1.bf16.msra.mxu0 0
  %493 = vmatprep.subr.bf16.mxu0 0
  %494 = vmatpush1.bf16.msra.mxu0 0
  %495 = vmatprep.subr.bf16.mxu0 0
  %496 = vmatpush1.bf16.msra.mxu0 %v37
  %497 = vmatprep.subr.bf16.mxu0 0
  %498 = vmatpush1.bf16.msra.mxu0 %v36
  %499 = vmatprep.subr.bf16.mxu0 0
  %500 = vmatpush2.bf16.msra.mxu0 0
  %501 = vmatprep.subr.bf16.mxu0 0
  %502 = vmatpush2.bf16.msra.mxu0 0
  %503 = vmatprep.subr.bf16.mxu0 0
  %504 = vmatpush2.bf16.msra.mxu0 0
  %505 = vmatprep.subr.bf16.mxu0 0
  %506 = vmatpush2.bf16.msra.mxu0 0
  %507 = vmatprep.subr.bf16.mxu0 0
  %508 = vmatpush2.bf16.msra.mxu0 0
  %509 = vmatprep.subr.bf16.mxu0 0
  %510 = vmatpush2.bf16.msra.mxu0 0
  %511 = vmatprep.subr.bf16.mxu0 0
  %512 = vmatpush2.bf16.msra.mxu0 0
  %513 = vmatprep.subr.bf16.mxu0 0
  %514 = vmatpush2.bf16.msra.mxu0 0
  %515 = vmatprep.mubr.bf16.mxu0 0
  %516 = vmatmul.mubr.bf16.gmra.mxu0 %v481
  %v517 = vpop.f32.mrf.mxu0
  %v518 = vadd.f32 0.0, %v517
  %v519 = vpop.f32.mrf.mxu0
  %v520 = vpop.f32.mrf.mxu0
  %v521 = vpop.f32.mrf.mxu0
  %522 = vdwg.mxu0
  %v523 = vadd.f32 %v477, %v518
  %v524 = vxor.u32 %v523, 2147483648
  %v525 = vmul.f32 %v524, 1.442695
  %v526 = vpow.pop %v525
  %v527 = vadd.f32 %v526, 1.0
  %v528 = vrcp.pop %v527
  %v529 = vmul.f32 1.0, %v528
  %v530 = vtanh.pop %v523
  %v531 = vmul.f32 %v529, %v454
  %533 = vrot.lane.b32.xlu0 %v530, 32
  %v534 = vpop.permute.xlu0 %533
  %v536 = vmul.f32 %v529, %v534
  %538 = vrot.lane.b32.xlu0 %v536, 32
  %v539 = vpop.permute.xlu0 %538
  %v541 = vadd.f32 %v531, %v539
  %v542 = vtanh.pop %v541
  %544 = vrot.lane.b32.xlu0 %v542, 32
  %v545 = vpop.permute.xlu0 %544
  %v547 = vmul.f32 %v529, %v545
  %v548 = vpack.c.bf16 %v547, %v547
  %v551 = vunpack.c.l.s4 1983009808
  %v552 = vunpack.c.0.s8 %v551
  %v553 = vlaneseq
  %v554 = vshrl.u32 %v553, 7
  %v555 = vsub.s32 %v552, %v554
  %v556 = vrot.slane %v548, %v555
  %557 = vrot.lane.b32.xlu0 %v556, 64
  %v558 = vpop.permute.xlu0 %557
  %s560 = scalar_lea.vmem %s2, 10
  %561 = vst.msk [vmem:[%s560] sm:$0x3] %vm125, %v558
  %s562 = scalar_lea.vmem %s0, 12
  %v563 = vld [vmem:[%s562] sm:$0x3]
  %v564 = vunpack.c.l.bf16 %v563
  %565 = vrot.lane.b32.xlu0 %v548, 64
  %v566 = vpop.permute.xlu0 %565
  %v568 = vsel %vm40, %v566, 0
  %570 = vmatprep.subr.bf16.mxu0 0
  %571 = vmatpush1.bf16.msra.mxu0 0
  %572 = vmatprep.subr.bf16.mxu0 0
  %573 = vmatpush1.bf16.msra.mxu0 0
  %574 = vmatprep.subr.bf16.mxu0 0
  %575 = vmatpush1.bf16.msra.mxu0 0
  %576 = vmatprep.subr.bf16.mxu0 0
  %577 = vmatpush1.bf16.msra.mxu0 0
  %578 = vmatprep.subr.bf16.mxu0 0
  %579 = vmatpush1.bf16.msra.mxu0 0
  %580 = vmatprep.subr.bf16.mxu0 0
  %581 = vmatpush1.bf16.msra.mxu0 0
  %582 = vmatprep.subr.bf16.mxu0 0
  %583 = vmatpush1.bf16.msra.mxu0 %v37
  %584 = vmatprep.subr.bf16.mxu0 0
  %585 = vmatpush1.bf16.msra.mxu0 %v36
  %586 = vmatprep.subr.bf16.mxu0 0
  %587 = vmatpush2.bf16.msra.mxu0 0
  %588 = vmatprep.subr.bf16.mxu0 0
  %589 = vmatpush2.bf16.msra.mxu0 0
  %590 = vmatprep.subr.bf16.mxu0 0
  %591 = vmatpush2.bf16.msra.mxu0 0
  %592 = vmatprep.subr.bf16.mxu0 0
  %593 = vmatpush2.bf16.msra.mxu0 0
  %594 = vmatprep.subr.bf16.mxu0 0
  %595 = vmatpush2.bf16.msra.mxu0 0
  %596 = vmatprep.subr.bf16.mxu0 0
  %597 = vmatpush2.bf16.msra.mxu0 0
  %598 = vmatprep.subr.bf16.mxu0 0
  %599 = vmatpush2.bf16.msra.mxu0 0
  %600 = vmatprep.subr.bf16.mxu0 0
  %601 = vmatpush2.bf16.msra.mxu0 0
  %602 = vmatprep.mubr.bf16.mxu0 0
  %603 = vmatmul.mubr.bf16.gmra.mxu0 %v568
  %v604 = vpop.f32.mrf.mxu0
  %v605 = vadd.f32 0.0, %v604
  %v606 = vpop.f32.mrf.mxu0
  %v607 = vpop.f32.mrf.mxu0
  %v608 = vpop.f32.mrf.mxu0
  %609 = vdwg.mxu0
  %v610 = vadd.f32 %v564, %v605
  %v611 = vxor.u32 %v610, 2147483648
  %v612 = vmul.f32 %v611, 1.442695
  %v613 = vpow.pop %v612
  %v614 = vadd.f32 %v613, 1.0
  %v615 = vrcp.pop %v614
  %v616 = vmul.f32 1.0, %v615
  %v617 = vtanh.pop %v610
  %v618 = vmul.f32 %v616, %v541
  %620 = vrot.lane.b32.xlu0 %v617, 32
  %v621 = vpop.permute.xlu0 %620
  %v623 = vmul.f32 %v616, %v621
  %625 = vrot.lane.b32.xlu0 %v623, 32
  %v626 = vpop.permute.xlu0 %625
  %v628 = vadd.f32 %v618, %v626
  %v629 = vtanh.pop %v628
  %631 = vrot.lane.b32.xlu0 %v629, 32
  %v632 = vpop.permute.xlu0 %631
  %v634 = vmul.f32 %v616, %v632
  %v635 = vpack.c.bf16 %v634, %v634
  %v638 = vunpack.c.l.s4 1983009808
  %v639 = vunpack.c.0.s8 %v638
  %v640 = vlaneseq
  %v641 = vshrl.u32 %v640, 7
  %v642 = vsub.s32 %v639, %v641
  %v643 = vrot.slane %v635, %v642
  %644 = vrot.lane.b32.xlu0 %v643, 64
  %v645 = vpop.permute.xlu0 %644
  %s647 = scalar_lea.vmem %s2, 12
  %648 = vst.msk [vmem:[%s647] sm:$0x3] %vm125, %v645
  %s649 = scalar_lea.vmem %s0, 14
  %v650 = vld [vmem:[%s649] sm:$0x3]
  %v651 = vunpack.c.l.bf16 %v650
  %652 = vrot.lane.b32.xlu0 %v635, 64
  %v653 = vpop.permute.xlu0 %652
  %v655 = vsel %vm40, %v653, 0
  %657 = vmatprep.subr.bf16.mxu0 0
  %658 = vmatpush1.bf16.msra.mxu0 0
  %659 = vmatprep.subr.bf16.mxu0 0
  %660 = vmatpush1.bf16.msra.mxu0 0
  %661 = vmatprep.subr.bf16.mxu0 0
  %662 = vmatpush1.bf16.msra.mxu0 0
  %663 = vmatprep.subr.bf16.mxu0 0
  %664 = vmatpush1.bf16.msra.mxu0 0
  %665 = vmatprep.subr.bf16.mxu0 0
  %666 = vmatpush1.bf16.msra.mxu0 0
  %667 = vmatprep.subr.bf16.mxu0 0
  %668 = vmatpush1.bf16.msra.mxu0 0
  %669 = vmatprep.subr.bf16.mxu0 0
  %670 = vmatpush1.bf16.msra.mxu0 %v37
  %671 = vmatprep.subr.bf16.mxu0 0
  %672 = vmatpush1.bf16.msra.mxu0 %v36
  %673 = vmatprep.subr.bf16.mxu0 0
  %674 = vmatpush2.bf16.msra.mxu0 0
  %675 = vmatprep.subr.bf16.mxu0 0
  %676 = vmatpush2.bf16.msra.mxu0 0
  %677 = vmatprep.subr.bf16.mxu0 0
  %678 = vmatpush2.bf16.msra.mxu0 0
  %679 = vmatprep.subr.bf16.mxu0 0
  %680 = vmatpush2.bf16.msra.mxu0 0
  %681 = vmatprep.subr.bf16.mxu0 0
  %682 = vmatpush2.bf16.msra.mxu0 0
  %683 = vmatprep.subr.bf16.mxu0 0
  %684 = vmatpush2.bf16.msra.mxu0 0
  %685 = vmatprep.subr.bf16.mxu0 0
  %686 = vmatpush2.bf16.msra.mxu0 0
  %687 = vmatprep.subr.bf16.mxu0 0
  %688 = vmatpush2.bf16.msra.mxu0 0
  %689 = vmatprep.mubr.bf16.mxu0 0
  %690 = vmatmul.mubr.bf16.gmra.mxu0 %v655
  %v691 = vpop.f32.mrf.mxu0
  %v692 = vadd.f32 0.0, %v691
  %v693 = vpop.f32.mrf.mxu0
  %v694 = vpop.f32.mrf.mxu0
  %v695 = vpop.f32.mrf.mxu0
  %696 = vdwg.mxu0
  %v697 = vadd.f32 %v651, %v692
  %v698 = vxor.u32 %v697, 2147483648
  %v699 = vmul.f32 %v698, 1.442695
  %v700 = vpow.pop %v699
  %v701 = vadd.f32 %v700, 1.0
  %v702 = vrcp.pop %v701
  %v703 = vmul.f32 1.0, %v702
  %v704 = vtanh.pop %v697
  %v705 = vmul.f32 %v703, %v628
  %707 = vrot.lane.b32.xlu0 %v704, 32
  %v708 = vpop.permute.xlu0 %707
  %v710 = vmul.f32 %v703, %v708
  %712 = vrot.lane.b32.xlu0 %v710, 32
  %v713 = vpop.permute.xlu0 %712
  %v715 = vadd.f32 %v705, %v713
  %v716 = vtanh.pop %v715
  %718 = vrot.lane.b32.xlu0 %v716, 32
  %v719 = vpop.permute.xlu0 %718
  %v721 = vmul.f32 %v703, %v719
  %v722 = vpack.c.bf16 %v721, %v721
  %v725 = vunpack.c.l.s4 1983009808
  %v726 = vunpack.c.0.s8 %v725
  %v727 = vlaneseq
  %v728 = vshrl.u32 %v727, 7
  %v729 = vsub.s32 %v726, %v728
  %v730 = vrot.slane %v722, %v729
  %731 = vrot.lane.b32.xlu0 %v730, 64
  %v732 = vpop.permute.xlu0 %731
  %s734 = scalar_lea.vmem %s2, 14
  %735 = vst.msk [vmem:[%s734] sm:$0x3] %vm125, %v732
  %737 = vrot.lane.b32.xlu0 %v721, 64
  %v738 = vpop.permute.xlu0 %737
  %vm740 = vcmask 257024
  %741 = vst.msk [vmem:[#allocation2] sm:$0xf] %vm740, %v738
  %743 = vrot.lane.b32.xlu0 %v715, 96
  %v744 = vpop.permute.xlu0 %743
  %746 = vst.msk [vmem:[#allocation3] sm:$0xf] %vm740, %v744
  // Predicated region
  $region14: #{lstm_forward.6} parent=0 // pred_check
    _
  $region15: #{lstm_forward.6} parent=0 // pred_check_branch
    %748 = sbr.rel (0) target = $region17
  $region16: #{lstm_forward.6} parent=0 // pred_region
    _
  $region17: #{lstm_forward.6} parent=0 // pred_fallthru
    _
  // Predicated region
  $region18: #{lstm_forward.6} parent=0 // pred_check
    _
  $region19: #{lstm_forward.6} parent=0 // pred_check_branch
    %750 = sbr.rel (0) target = $region21
  $region20: #{lstm_forward.6} parent=0 // pred_region
    _
  $region21: #{lstm_forward.6} parent=0 // pred_fallthru
    _

</llo_original>
